<compile_context>
chip_gen: v7x
topology: tpu7x:2x2x1
jax: 0.10.0
libtpu: 0.0.40
codegen_flags: <defaults>
</compile_context>

<pallas_src>
import jax
import jax.numpy as jnp
from jax import lax
from jax.experimental import pallas as pl
from jax.experimental.pallas import tpu as pltpu


# ----------------------------------------------------------------------------
# Kernel A — NCHW layout (W on lanes).  Used when C is small.
# One grid step = one (n, channel-block); channels looped inside.
# ----------------------------------------------------------------------------
def _dwconv7x7_nchw_kernel(x_ref, w_ref, b_ref, o_ref, xpad_ref):
    # x_ref    : (BC, H, W)        input channel block (VMEM)
    # w_ref    : (C*49,)     SMEM  flattened fused taps, row-major (c, kh, kw)
    # b_ref    : (C,)        SMEM  fused per-channel bias
    # o_ref    : (BC, H, W)        output channel block
    # xpad_ref : (H+6, W+6)  f32   VMEM padded-plane scratch (border kept zero)
    cblk = pl.program_id(1)
    BC, H, W = o_ref.shape

    # Zero only the 3-wide halo border strips (not the full plane): the
    # interior is fully overwritten for every channel below.  Re-done every
    # grid step so the kernel is safe under megacore grid sharding.
    xpad_ref[0:3, :] = jnp.zeros((3, W + 6), jnp.float32)
    xpad_ref[3 + H:, :] = jnp.zeros((3, W + 6), jnp.float32)
    xpad_ref[3:3 + H, 0:3] = jnp.zeros((H, 3), jnp.float32)
    xpad_ref[3:3 + H, 3 + W:] = jnp.zeros((H, 3), jnp.float32)

    def channel_body(ci, carry):
        c = cblk * BC + ci
        base = c * 49
        # Upcast + place this channel's plane inside the zero halo.
        xpad_ref[3:3 + H, 3:3 + W] = x_ref[ci].astype(jnp.float32)

        # Accumulator starts at the bias (one (H, W) fp32 value live at a time).
        acc = jnp.full((H, W), b_ref[c], jnp.float32)
        # j-outer / i-inner: 49 FMAs on (H, W+6) row bands, but only 7
        # lane-offset slices (XLU) per plane instead of 49.
        for j in range(7):
            part = xpad_ref[0:H, :] * w_ref[base + j]
            for i in range(1, 7):
                part = part + xpad_ref[i:i + H, :] * w_ref[base + i * 7 + j]
            acc = acc + part[:, j:j + W]
        o_ref[ci] = acc.astype(o_ref.dtype)
        return carry

    lax.fori_loop(0, BC, channel_body, 0)


# ----------------------------------------------------------------------------
# Kernel B — NHWC layout (C on lanes).  Used when C % 128 == 0.
# Both conv shifts are along non-lane axes (addressed loads, no lane rotates);
# taps/bias are full 128-lane vectors; stores are unmasked full-lane vst.
# ----------------------------------------------------------------------------
def _dwconv7x7_nhwc_kernel(x_ref, w_ref, b_ref, o_ref, xpad_ref):
    # x_ref    : (H, W, CB)          input block, channels on the lane axis
    # w_ref    : (7, 7, CB)   VMEM   fused taps for this channel block
    # b_ref    : (1, 1, CB)   VMEM   fused bias for this channel block
    # o_ref    : (H, W, CB)          output block
    # xpad_ref : (H+6, W+6, CB) f32  VMEM padded-block scratch
    H, W, CB = o_ref.shape

    # Zero only the halo border strips; interior overwritten just below.
    xpad_ref[0:3, :, :] = jnp.zeros((3, W + 6, CB), jnp.float32)
    xpad_ref[3 + H:, :, :] = jnp.zeros((3, W + 6, CB), jnp.float32)
    xpad_ref[3:3 + H, 0:3, :] = jnp.zeros((H, 3, CB), jnp.float32)
    xpad_ref[3:3 + H, 3 + W:, :] = jnp.zeros((H, 3, CB), jnp.float32)
    xpad_ref[3:3 + H, 3:3 + W, :] = x_ref[...].astype(jnp.float32)

    bias = b_ref[0, 0, :]   # (CB,), already fp32

    def row_body(y, carry):
        # One output row at a time keeps the live accumulator tiny.
        acc = jnp.zeros((1, W, CB), jnp.float32)
        for i in range(7):
            row = pl.ds(y + i, 1)
            for j in range(7):
                acc = acc + xpad_ref[row, j:j + W, :] * w_ref[i, j, :]
        o_ref[pl.ds(y, 1)] = (acc + bias).astype(o_ref.dtype)
        return carry

    lax.fori_loop(0, H, row_body, 0)


# ----------------------------------------------------------------------------
# Parameter fusion (mirrors RepDWConvM.fuse()) — plain-JAX glue, traced once
# under jit.
# ----------------------------------------------------------------------------
def _fuse_params(p):
    w77 = p["w77"]                                               # (C, 1, 7, 7)
    w53 = jnp.pad(p["w53"], ((0, 0), (0, 0), (1, 1), (2, 2)))    # (5,3) -> (7,7)
    w35 = jnp.pad(p["w35"], ((0, 0), (0, 0), (2, 2), (1, 1)))    # (3,5) -> (7,7)
    # Separable branches: outer product of (1,k) and (k,1) kernels.
    w7 = jnp.einsum("bcnx,bcyn->bcyx", p["w7w"], p["w7h"])       # (C, 1, 7, 7)
    w5 = jnp.einsum("bcnx,bcyn->bcyx", p["w5w"], p["w5h"])       # (C, 1, 5, 5)
    w5 = jnp.pad(w5, ((0, 0), (0, 0), (1, 1), (1, 1)))
    w = w77 + w53 + w35 + w7 + w5                                # (C, 1, 7, 7)
    b = p["b77"] + p["b53"] + p["b35"]                           # (C,)
    return w, b


def _pick_bc(C, H, W, itemsize, target_bytes=1 << 20, cap=64):
    """Largest divisor of C keeping the (BC, H, W) block at ~<= 1 MiB."""
    budget = max(1, target_bytes // max(1, H * W * itemsize))
    limit = max(1, min(C, cap, budget))
    bc = 1
    for d in range(1, limit + 1):
        if C % d == 0:
            bc = d
    return bc


# ----------------------------------------------------------------------------
# pallas_call wrappers.
# ----------------------------------------------------------------------------
def _call_nchw(x_nchw, w_fused, b_fused):
    N, C, H, W = x_nchw.shape
    w_flat = w_fused[:, 0, :, :].reshape(C * 49).astype(jnp.float32)   # (C*49,)
    b_vec = b_fused.astype(jnp.float32)                                # (C,)
    BC = _pick_bc(C, H, W, x_nchw.dtype.itemsize)
    return pl.pallas_call(
        _dwconv7x7_nchw_kernel,
        out_shape=jax.ShapeDtypeStruct((N, C, H, W), x_nchw.dtype),
        grid=(N, C // BC),
        in_specs=[
            pl.BlockSpec((None, BC, H, W), lambda n, cb: (n, cb, 0, 0)),
            # small scalar tables (1-D to avoid (8,128)-word SMEM padding)
            pl.BlockSpec(memory_space=pltpu.MemorySpace.SMEM),
            pl.BlockSpec(memory_space=pltpu.MemorySpace.SMEM),
        ],
        out_specs=pl.BlockSpec((None, BC, H, W), lambda n, cb: (n, cb, 0, 0)),
        scratch_shapes=[pltpu.VMEM((H + 6, W + 6), jnp.float32)],
        compiler_params=pltpu.CompilerParams(
            dimension_semantics=("parallel", "parallel"),
            vmem_limit_bytes=32 * 1024 * 1024,   # safe on v5e/v6e/v7x
        ),
    )(x_nchw, w_flat, b_vec)


def _call_nhwc(x_nhwc, w_fused, b_fused, CB=128):
    N, H, W, C = x_nhwc.shape
    w_hwc = jnp.transpose(w_fused[:, 0, :, :], (1, 2, 0)).astype(jnp.float32)  # (7,7,C)
    b_11c = b_fused.reshape(1, 1, C).astype(jnp.float32)                       # (1,1,C)
    return pl.pallas_call(
        _dwconv7x7_nhwc_kernel,
        out_shape=jax.ShapeDtypeStruct((N, H, W, C), x_nhwc.dtype),
        grid=(N, C // CB),
        in_specs=[
            pl.BlockSpec((None, H, W, CB), lambda n, cb: (n, 0, 0, cb)),
            pl.BlockSpec((7, 7, CB), lambda n, cb: (0, 0, cb)),
            pl.BlockSpec((1, 1, CB), lambda n, cb: (0, 0, cb)),
        ],
        out_specs=pl.BlockSpec((None, H, W, CB), lambda n, cb: (n, 0, 0, cb)),
        scratch_shapes=[pltpu.VMEM((H + 6, W + 6, CB), jnp.float32)],
        compiler_params=pltpu.CompilerParams(
            dimension_semantics=("parallel", "parallel"),
            vmem_limit_bytes=32 * 1024 * 1024,
        ),
    )(x_nhwc, w_hwc, b_11c)


def _rep_dw_conv_m(x_nchw, params, stride=1):
    assert stride == 1, "only stride=1 supported (fused-7x7 identity)"
    N, C, H, W = x_nchw.shape
    w_fused, b_fused = _fuse_params(params)
    if C >= 128 and C % 128 == 0:
        # Lane-dense C-on-lanes path: full 128-lane utilization, no lane
        # shifts, no per-tap scalar broadcasts, unmasked output stores.
        x_nhwc = jnp.transpose(x_nchw, (0, 2, 3, 1))
        y = _call_nhwc(x_nhwc, w_fused, b_fused, CB=128)
        return jnp.transpose(y, (0, 3, 1, 2))
    return _call_nchw(x_nchw, w_fused, b_fused)


# Public entry: jit so the fusion einsums/pads trace once per shape.
rep_dw_conv_m = jax.jit(_rep_dw_conv_m, static_argnames=("stride",))


# ----------------------------------------------------------------------------
# Pure-JAX reference of the *unfused* forward (sum of the 5 branches).
# ----------------------------------------------------------------------------
def _dw_conv_ref(x_nhwc, w_torch, bias, pad_hw):
    C = x_nhwc.shape[-1]
    w_hwio = jnp.transpose(w_torch, (2, 3, 1, 0))            # (kh, kw, 1, C)
    y = jax.lax.conv_general_dilated(
        x_nhwc, w_hwio,
        window_strides=(1, 1),
        padding=[(pad_hw[0], pad_hw[0]), (pad_hw[1], pad_hw[1])],
        dimension_numbers=("NHWC", "HWIO", "NHWC"),
        feature_group_count=C,
    )
    if bias is not None:
        y = y + bias
    return y


def _forward_reference(x_nchw, p):
    x = jnp.transpose(x_nchw, (0, 2, 3, 1))
    y = _dw_conv_ref(x, p["w77"], p["b77"], (3, 3))
    y = y + _dw_conv_ref(x, p["w53"], p["b53"], (2, 1))
    y = y + _dw_conv_ref(x, p["w35"], p["b35"], (1, 2))
    y = y + _dw_conv_ref(_dw_conv_ref(x, p["w7w"], None, (0, 3)), p["w7h"], None, (3, 0))
    y = y + _dw_conv_ref(_dw_conv_ref(x, p["w5w"], None, (0, 2)), p["w5h"], None, (2, 0))
    return jnp.transpose(y, (0, 3, 1, 2))


def _make_params(key, C):
    ks = jax.random.split(key, 10)
    return {
        "w77": 0.1 * jax.random.normal(ks[0], (C, 1, 7, 7), jnp.float32),
        "b77": 0.1 * jax.random.normal(ks[1], (C,), jnp.float32),
        "w53": 0.1 * jax.random.normal(ks[2], (C, 1, 5, 3), jnp.float32),
        "b53": 0.1 * jax.random.normal(ks[3], (C,), jnp.float32),
        "w35": 0.1 * jax.random.normal(ks[4], (C, 1, 3, 5), jnp.float32),
        "b35": 0.1 * jax.random.normal(ks[5], (C,), jnp.float32),
        "w7w": 0.1 * jax.random.normal(ks[6], (C, 1, 1, 7), jnp.float32),
        "w7h": 0.1 * jax.random.normal(ks[7], (C, 1, 7, 1), jnp.float32),
        "w5w": 0.1 * jax.random.normal(ks[8], (C, 1, 1, 5), jnp.float32),
        "w5h": 0.1 * jax.random.normal(ks[9], (C, 1, 5, 1), jnp.float32),
    }


# ----------------------------------------------------------------------------
if __name__ == "__main__":
    key = jax.random.PRNGKey(0)
    k_small, k_big = jax.random.split(key)

    # --- small-C case: exercises the NCHW (W-on-lanes) channel-blocked kernel
    N, C, H, W = 2, 4, 16, 16
    kx, kp = jax.random.split(k_small)
    x = jax.random.normal(kx, (N, C, H, W), jnp.float32)
    params = _make_params(kp, C)

    y = jax.block_until_ready(rep_dw_conv_m(x, params))
    y_ref = _forward_reference(x, params)
    assert y.shape == (N, C, H, W)
    assert jnp.allclose(y, y_ref, atol=2e-4, rtol=2e-4), "NCHW-path mismatch vs. reference"

    # --- C=128 case: exercises the NHWC (C-on-lanes) kernel
    N2, C2, H2, W2 = 1, 128, 16, 16
    kx2, kp2 = jax.random.split(k_big)
    x2 = jax.random.normal(kx2, (N2, C2, H2, W2), jnp.float32)
    params2 = _make_params(kp2, C2)

    y2 = jax.block_until_ready(rep_dw_conv_m(x2, params2))
    y2_ref = _forward_reference(x2, params2)
    assert y2.shape == (N2, C2, H2, W2)
    assert jnp.allclose(y2, y2_ref, atol=2e-4, rtol=2e-4), "NHWC-path mismatch vs. reference"

    print("KERNEL_OK")
</pallas_src>

<mosaic_0001>
module attributes {stable_mosaic.version = 11 : i64} {
  func.func @_dwconv7x7_nchw_kernel(%arg0: i32, %arg1: i32, %arg2: memref<1x4x16x16xf32, #tpu.memory_space<vmem>>, %arg3: memref<196xf32, #tpu.memory_space<smem>>, %arg4: memref<4xf32, #tpu.memory_space<smem>>, %arg5: memref<1x4x16x16xf32, #tpu.memory_space<vmem>>, %arg6: memref<22x22xf32, #tpu.memory_space<vmem>>) attributes {dimension_semantics = [#tpu.dimension_semantics<parallel>, #tpu.dimension_semantics<parallel>], iteration_bounds = array<i64: 2, 1>, scalar_prefetch = 0 : i64, scratch_operands = 1 : i64, tpu.core_type = #tpu.core_type<tc>, window_params = [{transform_indices = @transform_0, window_bounds = array<i64: 1, 4, 16, 16>}, {transform_indices = @transform_1, window_bounds = array<i64: 196>}, {transform_indices = @transform_2, window_bounds = array<i64: 4>}, {transform_indices = @transform_3, window_bounds = array<i64: 1, 4, 16, 16>}]} {
    %cst = arith.constant 0.000000e+00 : f32
    %0 = vector.broadcast %cst : f32 to vector<3x22xf32>
    %c0 = arith.constant 0 : index
    %c0_0 = arith.constant 0 : index
    %1 = vector.load %arg6[%c0, %c0_0] : memref<22x22xf32, #tpu.memory_space<vmem>>, vector<3x22xf32>
    tpu.vector_store %arg6[%c0, %c0_0], %0 {strides = array<i32>} : memref<22x22xf32, #tpu.memory_space<vmem>>, vector<3x22xf32>,
    %cst_1 = arith.constant 0.000000e+00 : f32
    %2 = vector.broadcast %cst_1 : f32 to vector<3x22xf32>
    %c19 = arith.constant 19 : index
    %c0_2 = arith.constant 0 : index
    %3 = vector.load %arg6[%c19, %c0_2] : memref<22x22xf32, #tpu.memory_space<vmem>>, vector<3x22xf32>
    tpu.vector_store %arg6[%c19, %c0_2], %2 {strides = array<i32>} : memref<22x22xf32, #tpu.memory_space<vmem>>, vector<3x22xf32>,
    %cst_3 = arith.constant 0.000000e+00 : f32
    %4 = vector.broadcast %cst_3 : f32 to vector<16x3xf32>
    %c3 = arith.constant 3 : index
    %c0_4 = arith.constant 0 : index
    %5 = vector.load %arg6[%c3, %c0_4] : memref<22x22xf32, #tpu.memory_space<vmem>>, vector<16x3xf32>
    tpu.vector_store %arg6[%c3, %c0_4], %4 {strides = array<i32>} : memref<22x22xf32, #tpu.memory_space<vmem>>, vector<16x3xf32>,
    %cst_5 = arith.constant 0.000000e+00 : f32
    %6 = vector.broadcast %cst_5 : f32 to vector<16x3xf32>
    %c3_6 = arith.constant 3 : index
    %c19_7 = arith.constant 19 : index
    %7 = vector.load %arg6[%c3_6, %c19_7] : memref<22x22xf32, #tpu.memory_space<vmem>>, vector<16x3xf32>
    tpu.vector_store %arg6[%c3_6, %c19_7], %6 {strides = array<i32>} : memref<22x22xf32, #tpu.memory_space<vmem>>, vector<16x3xf32>,
    %c0_i32 = arith.constant 0 : i32
    %c4_i32 = arith.constant 4 : i32
    %8 = arith.addi %c0_i32, %c4_i32 : i32
    %c1_i32 = arith.constant 1 : i32
    scf.for %arg7 = %c0_i32 to %8 step %c1_i32  : i32 {
      %c4_i32_9 = arith.constant 4 : i32
      %9 = arith.muli %arg1, %c4_i32_9 : i32
      %10 = arith.addi %9, %arg7 : i32
      %c49_i32 = arith.constant 49 : i32
      %11 = arith.muli %10, %c49_i32 : i32
      %c0_10 = arith.constant 0 : index
      %12 = arith.index_cast %arg7 : i32 to index
      %c0_11 = arith.constant 0 : index
      %c0_12 = arith.constant 0 : index
      %13 = vector.load %arg2[%c0_10, %12, %c0_11, %c0_12] : memref<1x4x16x16xf32, #tpu.memory_space<vmem>>, vector<1x1x16x16xf32>
      %14 = vector.shape_cast %13 : vector<1x1x16x16xf32> to vector<16x16xf32>
      %c3_13 = arith.constant 3 : index
      %c3_14 = arith.constant 3 : index
      %15 = vector.load %arg6[%c3_13, %c3_14] : memref<22x22xf32, #tpu.memory_space<vmem>>, vector<16x16xf32>
      tpu.vector_store %arg6[%c3_13, %c3_14], %14 {strides = array<i32>} : memref<22x22xf32, #tpu.memory_space<vmem>>, vector<16x16xf32>,
      %16 = arith.index_cast %10 : i32 to index
      %17 = memref.load %arg4[%16] : memref<4xf32, #tpu.memory_space<smem>>
      %18 = vector.broadcast %17 : f32 to vector<16x16xf32>
      %c0_15 = arith.constant 0 : index
      %c0_16 = arith.constant 0 : index
      %19 = vector.load %arg6[%c0_15, %c0_16] : memref<22x22xf32, #tpu.memory_space<vmem>>, vector<16x22xf32>
      %c0_i32_17 = arith.constant 0 : i32
      %20 = arith.addi %11, %c0_i32_17 : i32
      %21 = arith.index_cast %20 : i32 to index
      %22 = memref.load %arg3[%21] : memref<196xf32, #tpu.memory_space<smem>>
      %23 = vector.broadcast %22 : f32 to vector<16x22xf32>
      %24 = arith.mulf %19, %23 : vector<16x22xf32>
      %c1 = arith.constant 1 : index
      %c0_18 = arith.constant 0 : index
      %25 = vector.load %arg6[%c1, %c0_18] : memref<22x22xf32, #tpu.memory_space<vmem>>, vector<16x22xf32>
      %c7_i32 = arith.constant 7 : i32
      %26 = arith.addi %11, %c7_i32 : i32
      %c0_i32_19 = arith.constant 0 : i32
      %27 = arith.addi %26, %c0_i32_19 : i32
      %28 = arith.index_cast %27 : i32 to index
      %29 = memref.load %arg3[%28] : memref<196xf32, #tpu.memory_space<smem>>
      %30 = vector.broadcast %29 : f32 to vector<16x22xf32>
      %31 = arith.mulf %25, %30 : vector<16x22xf32>
      %32 = arith.addf %24, %31 : vector<16x22xf32>
      %c2 = arith.constant 2 : index
      %c0_20 = arith.constant 0 : index
      %33 = vector.load %arg6[%c2, %c0_20] : memref<22x22xf32, #tpu.memory_space<vmem>>, vector<16x22xf32>
      %c14_i32 = arith.constant 14 : i32
      %34 = arith.addi %11, %c14_i32 : i32
      %c0_i32_21 = arith.constant 0 : i32
      %35 = arith.addi %34, %c0_i32_21 : i32
      %36 = arith.index_cast %35 : i32 to index
      %37 = memref.load %arg3[%36] : memref<196xf32, #tpu.memory_space<smem>>
      %38 = vector.broadcast %37 : f32 to vector<16x22xf32>
      %39 = arith.mulf %33, %38 : vector<16x22xf32>
      %40 = arith.addf %32, %39 : vector<16x22xf32>
      %c3_22 = arith.constant 3 : index
      %c0_23 = arith.constant 0 : index
      %41 = vector.load %arg6[%c3_22, %c0_23] : memref<22x22xf32, #tpu.memory_space<vmem>>, vector<16x22xf32>
      %c21_i32 = arith.constant 21 : i32
      %42 = arith.addi %11, %c21_i32 : i32
      %c0_i32_24 = arith.constant 0 : i32
      %43 = arith.addi %42, %c0_i32_24 : i32
      %44 = arith.index_cast %43 : i32 to index
      %45 = memref.load %arg3[%44] : memref<196xf32, #tpu.memory_space<smem>>
      %46 = vector.broadcast %45 : f32 to vector<16x22xf32>
      %47 = arith.mulf %41, %46 : vector<16x22xf32>
      %48 = arith.addf %40, %47 : vector<16x22xf32>
      %c4 = arith.constant 4 : index
      %c0_25 = arith.constant 0 : index
      %49 = vector.load %arg6[%c4, %c0_25] : memref<22x22xf32, #tpu.memory_space<vmem>>, vector<16x22xf32>
      %c28_i32 = arith.constant 28 : i32
      %50 = arith.addi %11, %c28_i32 : i32
      %c0_i32_26 = arith.constant 0 : i32
      %51 = arith.addi %50, %c0_i32_26 : i32
      %52 = arith.index_cast %51 : i32 to index
      %53 = memref.load %arg3[%52] : memref<196xf32, #tpu.memory_space<smem>>
      %54 = vector.broadcast %53 : f32 to vector<16x22xf32>
      %55 = arith.mulf %49, %54 : vector<16x22xf32>
      %56 = arith.addf %48, %55 : vector<16x22xf32>
      %c5 = arith.constant 5 : index
      %c0_27 = arith.constant 0 : index
      %57 = vector.load %arg6[%c5, %c0_27] : memref<22x22xf32, #tpu.memory_space<vmem>>, vector<16x22xf32>
      %c35_i32 = arith.constant 35 : i32
      %58 = arith.addi %11, %c35_i32 : i32
      %c0_i32_28 = arith.constant 0 : i32
      %59 = arith.addi %58, %c0_i32_28 : i32
      %60 = arith.index_cast %59 : i32 to index
      %61 = memref.load %arg3[%60] : memref<196xf32, #tpu.memory_space<smem>>
      %62 = vector.broadcast %61 : f32 to vector<16x22xf32>
      %63 = arith.mulf %57, %62 : vector<16x22xf32>
      %64 = arith.addf %56, %63 : vector<16x22xf32>
      %c6 = arith.constant 6 : index
      %c0_29 = arith.constant 0 : index
      %65 = vector.load %arg6[%c6, %c0_29] : memref<22x22xf32, #tpu.memory_space<vmem>>, vector<16x22xf32>
      %c42_i32 = arith.constant 42 : i32
      %66 = arith.addi %11, %c42_i32 : i32
      %c0_i32_30 = arith.constant 0 : i32
      %67 = arith.addi %66, %c0_i32_30 : i32
      %68 = arith.index_cast %67 : i32 to index
      %69 = memref.load %arg3[%68] : memref<196xf32, #tpu.memory_space<smem>>
      %70 = vector.broadcast %69 : f32 to vector<16x22xf32>
      %71 = arith.mulf %65, %70 : vector<16x22xf32>
      %72 = arith.addf %64, %71 : vector<16x22xf32>
      %73 = vector.extract_strided_slice %72 {offsets = [0, 0], sizes = [16, 16], strides = [1, 1]} : vector<16x22xf32> to vector<16x16xf32>
      %74 = arith.addf %18, %73 : vector<16x16xf32>
      %c0_31 = arith.constant 0 : index
      %c0_32 = arith.constant 0 : index
      %75 = vector.load %arg6[%c0_31, %c0_32] : memref<22x22xf32, #tpu.memory_space<vmem>>, vector<16x22xf32>
      %c1_i32_33 = arith.constant 1 : i32
      %76 = arith.addi %11, %c1_i32_33 : i32
      %77 = arith.index_cast %76 : i32 to index
      %78 = memref.load %arg3[%77] : memref<196xf32, #tpu.memory_space<smem>>
      %79 = vector.broadcast %78 : f32 to vector<16x22xf32>
      %80 = arith.mulf %75, %79 : vector<16x22xf32>
      %c1_34 = arith.constant 1 : index
      %c0_35 = arith.constant 0 : index
      %81 = vector.load %arg6[%c1_34, %c0_35] : memref<22x22xf32, #tpu.memory_space<vmem>>, vector<16x22xf32>
      %c7_i32_36 = arith.constant 7 : i32
      %82 = arith.addi %11, %c7_i32_36 : i32
      %c1_i32_37 = arith.constant 1 : i32
      %83 = arith.addi %82, %c1_i32_37 : i32
      %84 = arith.index_cast %83 : i32 to index
      %85 = memref.load %arg3[%84] : memref<196xf32, #tpu.memory_space<smem>>
      %86 = vector.broadcast %85 : f32 to vector<16x22xf32>
      %87 = arith.mulf %81, %86 : vector<16x22xf32>
      %88 = arith.addf %80, %87 : vector<16x22xf32>
      %c2_38 = arith.constant 2 : index
      %c0_39 = arith.constant 0 : index
      %89 = vector.load %arg6[%c2_38, %c0_39] : memref<22x22xf32, #tpu.memory_space<vmem>>, vector<16x22xf32>
      %c14_i32_40 = arith.constant 14 : i32
      %90 = arith.addi %11, %c14_i32_40 : i32
      %c1_i32_41 = arith.constant 1 : i32
      %91 = arith.addi %90, %c1_i32_41 : i32
      %92 = arith.index_cast %91 : i32 to index
      %93 = memref.load %arg3[%92] : memref<196xf32, #tpu.memory_space<smem>>
      %94 = vector.broadcast %93 : f32 to vector<16x22xf32>
      %95 = arith.mulf %89, %94 : vector<16x22xf32>
      %96 = arith.addf %88, %95 : vector<16x22xf32>
      %c3_42 = arith.constant 3 : index
      %c0_43 = arith.constant 0 : index
      %97 = vector.load %arg6[%c3_42, %c0_43] : memref<22x22xf32, #tpu.memory_space<vmem>>, vector<16x22xf32>
      %c21_i32_44 = arith.constant 21 : i32
      %98 = arith.addi %11, %c21_i32_44 : i32
      %c1_i32_45 = arith.constant 1 : i32
      %99 = arith.addi %98, %c1_i32_45 : i32
      %100 = arith.index_cast %99 : i32 to index
      %101 = memref.load %arg3[%100] : memref<196xf32, #tpu.memory_space<smem>>
      %102 = vector.broadcast %101 : f32 to vector<16x22xf32>
      %103 = arith.mulf %97, %102 : vector<16x22xf32>
      %104 = arith.addf %96, %103 : vector<16x22xf32>
      %c4_46 = arith.constant 4 : index
      %c0_47 = arith.constant 0 : index
      %105 = vector.load %arg6[%c4_46, %c0_47] : memref<22x22xf32, #tpu.memory_space<vmem>>, vector<16x22xf32>
      %c28_i32_48 = arith.constant 28 : i32
      %106 = arith.addi %11, %c28_i32_48 : i32
      %c1_i32_49 = arith.constant 1 : i32
      %107 = arith.addi %106, %c1_i32_49 : i32
      %108 = arith.index_cast %107 : i32 to index
      %109 = memref.load %arg3[%108] : memref<196xf32, #tpu.memory_space<smem>>
      %110 = vector.broadcast %109 : f32 to vector<16x22xf32>
      %111 = arith.mulf %105, %110 : vector<16x22xf32>
      %112 = arith.addf %104, %111 : vector<16x22xf32>
      %c5_50 = arith.constant 5 : index
      %c0_51 = arith.constant 0 : index
      %113 = vector.load %arg6[%c5_50, %c0_51] : memref<22x22xf32, #tpu.memory_space<vmem>>, vector<16x22xf32>
      %c35_i32_52 = arith.constant 35 : i32
      %114 = arith.addi %11, %c35_i32_52 : i32
      %c1_i32_53 = arith.constant 1 : i32
      %115 = arith.addi %114, %c1_i32_53 : i32
      %116 = arith.index_cast %115 : i32 to index
      %117 = memref.load %arg3[%116] : memref<196xf32, #tpu.memory_space<smem>>
      %118 = vector.broadcast %117 : f32 to vector<16x22xf32>
      %119 = arith.mulf %113, %118 : vector<16x22xf32>
      %120 = arith.addf %112, %119 : vector<16x22xf32>
      %c6_54 = arith.constant 6 : index
      %c0_55 = arith.constant 0 : index
      %121 = vector.load %arg6[%c6_54, %c0_55] : memref<22x22xf32, #tpu.memory_space<vmem>>, vector<16x22xf32>
      %c42_i32_56 = arith.constant 42 : i32
      %122 = arith.addi %11, %c42_i32_56 : i32
      %c1_i32_57 = arith.constant 1 : i32
      %123 = arith.addi %122, %c1_i32_57 : i32
      %124 = arith.index_cast %123 : i32 to index
      %125 = memref.load %arg3[%124] : memref<196xf32, #tpu.memory_space<smem>>
      %126 = vector.broadcast %125 : f32 to vector<16x22xf32>
      %127 = arith.mulf %121, %126 : vector<16x22xf32>
      %128 = arith.addf %120, %127 : vector<16x22xf32>
      %129 = vector.extract_strided_slice %128 {offsets = [0, 1], sizes = [16, 16], strides = [1, 1]} : vector<16x22xf32> to vector<16x16xf32>
      %130 = arith.addf %74, %129 : vector<16x16xf32>
      %c0_58 = arith.constant 0 : index
      %c0_59 = arith.constant 0 : index
      %131 = vector.load %arg6[%c0_58, %c0_59] : memref<22x22xf32, #tpu.memory_space<vmem>>, vector<16x22xf32>
      %c2_i32 = arith.constant 2 : i32
      %132 = arith.addi %11, %c2_i32 : i32
      %133 = arith.index_cast %132 : i32 to index
      %134 = memref.load %arg3[%133] : memref<196xf32, #tpu.memory_space<smem>>
      %135 = vector.broadcast %134 : f32 to vector<16x22xf32>
      %136 = arith.mulf %131, %135 : vector<16x22xf32>
      %c1_60 = arith.constant 1 : index
      %c0_61 = arith.constant 0 : index
      %137 = vector.load %arg6[%c1_60, %c0_61] : memref<22x22xf32, #tpu.memory_space<vmem>>, vector<16x22xf32>
      %c7_i32_62 = arith.constant 7 : i32
      %138 = arith.addi %11, %c7_i32_62 : i32
      %c2_i32_63 = arith.constant 2 : i32
      %139 = arith.addi %138, %c2_i32_63 : i32
      %140 = arith.index_cast %139 : i32 to index
      %141 = memref.load %arg3[%140] : memref<196xf32, #tpu.memory_space<smem>>
      %142 = vector.broadcast %141 : f32 to vector<16x22xf32>
      %143 = arith.mulf %137, %142 : vector<16x22xf32>
      %144 = arith.addf %136, %143 : vector<16x22xf32>
      %c2_64 = arith.constant 2 : index
      %c0_65 = arith.constant 0 : index
      %145 = vector.load %arg6[%c2_64, %c0_65] : memref<22x22xf32, #tpu.memory_space<vmem>>, vector<16x22xf32>
      %c14_i32_66 = arith.constant 14 : i32
      %146 = arith.addi %11, %c14_i32_66 : i32
      %c2_i32_67 = arith.constant 2 : i32
      %147 = arith.addi %146, %c2_i32_67 : i32
      %148 = arith.index_cast %147 : i32 to index
      %149 = memref.load %arg3[%148] : memref<196xf32, #tpu.memory_space<smem>>
      %150 = vector.broadcast %149 : f32 to vector<16x22xf32>
      %151 = arith.mulf %145, %150 : vector<16x22xf32>
      %152 = arith.addf %144, %151 : vector<16x22xf32>
      %c3_68 = arith.constant 3 : index
      %c0_69 = arith.constant 0 : index
      %153 = vector.load %arg6[%c3_68, %c0_69] : memref<22x22xf32, #tpu.memory_space<vmem>>, vector<16x22xf32>
      %c21_i32_70 = arith.constant 21 : i32
      %154 = arith.addi %11, %c21_i32_70 : i32
      %c2_i32_71 = arith.constant 2 : i32
      %155 = arith.addi %154, %c2_i32_71 : i32
      %156 = arith.index_cast %155 : i32 to index
      %157 = memref.load %arg3[%156] : memref<196xf32, #tpu.memory_space<smem>>
      %158 = vector.broadcast %157 : f32 to vector<16x22xf32>
      %159 = arith.mulf %153, %158 : vector<16x22xf32>
      %160 = arith.addf %152, %159 : vector<16x22xf32>
      %c4_72 = arith.constant 4 : index
      %c0_73 = arith.constant 0 : index
      %161 = vector.load %arg6[%c4_72, %c0_73] : memref<22x22xf32, #tpu.memory_space<vmem>>, vector<16x22xf32>
      %c28_i32_74 = arith.constant 28 : i32
      %162 = arith.addi %11, %c28_i32_74 : i32
      %c2_i32_75 = arith.constant 2 : i32
      %163 = arith.addi %162, %c2_i32_75 : i32
      %164 = arith.index_cast %163 : i32 to index
      %165 = memref.load %arg3[%164] : memref<196xf32, #tpu.memory_space<smem>>
      %166 = vector.broadcast %165 : f32 to vector<16x22xf32>
      %167 = arith.mulf %161, %166 : vector<16x22xf32>
      %168 = arith.addf %160, %167 : vector<16x22xf32>
      %c5_76 = arith.constant 5 : index
      %c0_77 = arith.constant 0 : index
      %169 = vector.load %arg6[%c5_76, %c0_77] : memref<22x22xf32, #tpu.memory_space<vmem>>, vector<16x22xf32>
      %c35_i32_78 = arith.constant 35 : i32
      %170 = arith.addi %11, %c35_i32_78 : i32
      %c2_i32_79 = arith.constant 2 : i32
      %171 = arith.addi %170, %c2_i32_79 : i32
      %172 = arith.index_cast %171 : i32 to index
      %173 = memref.load %arg3[%172] : memref<196xf32, #tpu.memory_space<smem>>
      %174 = vector.broadcast %173 : f32 to vector<16x22xf32>
      %175 = arith.mulf %169, %174 : vector<16x22xf32>
      %176 = arith.addf %168, %175 : vector<16x22xf32>
      %c6_80 = arith.constant 6 : index
      %c0_81 = arith.constant 0 : index
      %177 = vector.load %arg6[%c6_80, %c0_81] : memref<22x22xf32, #tpu.memory_space<vmem>>, vector<16x22xf32>
      %c42_i32_82 = arith.constant 42 : i32
      %178 = arith.addi %11, %c42_i32_82 : i32
      %c2_i32_83 = arith.constant 2 : i32
      %179 = arith.addi %178, %c2_i32_83 : i32
      %180 = arith.index_cast %179 : i32 to index
      %181 = memref.load %arg3[%180] : memref<196xf32, #tpu.memory_space<smem>>
      %182 = vector.broadcast %181 : f32 to vector<16x22xf32>
      %183 = arith.mulf %177, %182 : vector<16x22xf32>
      %184 = arith.addf %176, %183 : vector<16x22xf32>
      %185 = vector.extract_strided_slice %184 {offsets = [0, 2], sizes = [16, 16], strides = [1, 1]} : vector<16x22xf32> to vector<16x16xf32>
      %186 = arith.addf %130, %185 : vector<16x16xf32>
      %c0_84 = arith.constant 0 : index
      %c0_85 = arith.constant 0 : index
      %187 = vector.load %arg6[%c0_84, %c0_85] : memref<22x22xf32, #tpu.memory_space<vmem>>, vector<16x22xf32>
      %c3_i32 = arith.constant 3 : i32
      %188 = arith.addi %11, %c3_i32 : i32
      %189 = arith.index_cast %188 : i32 to index
      %190 = memref.load %arg3[%189] : memref<196xf32, #tpu.memory_space<smem>>
      %191 = vector.broadcast %190 : f32 to vector<16x22xf32>
      %192 = arith.mulf %187, %191 : vector<16x22xf32>
      %c1_86 = arith.constant 1 : index
      %c0_87 = arith.constant 0 : index
      %193 = vector.load %arg6[%c1_86, %c0_87] : memref<22x22xf32, #tpu.memory_space<vmem>>, vector<16x22xf32>
      %c7_i32_88 = arith.constant 7 : i32
      %194 = arith.addi %11, %c7_i32_88 : i32
      %c3_i32_89 = arith.constant 3 : i32
      %195 = arith.addi %194, %c3_i32_89 : i32
      %196 = arith.index_cast %195 : i32 to index
      %197 = memref.load %arg3[%196] : memref<196xf32, #tpu.memory_space<smem>>
      %198 = vector.broadcast %197 : f32 to vector<16x22xf32>
      %199 = arith.mulf %193, %198 : vector<16x22xf32>
      %200 = arith.addf %192, %199 : vector<16x22xf32>
      %c2_90 = arith.constant 2 : index
      %c0_91 = arith.constant 0 : index
      %201 = vector.load %arg6[%c2_90, %c0_91] : memref<22x22xf32, #tpu.memory_space<vmem>>, vector<16x22xf32>
      %c14_i32_92 = arith.constant 14 : i32
      %202 = arith.addi %11, %c14_i32_92 : i32
      %c3_i32_93 = arith.constant 3 : i32
      %203 = arith.addi %202, %c3_i32_93 : i32
      %204 = arith.index_cast %203 : i32 to index
      %205 = memref.load %arg3[%204] : memref<196xf32, #tpu.memory_space<smem>>
      %206 = vector.broadcast %205 : f32 to vector<16x22xf32>
      %207 = arith.mulf %201, %206 : vector<16x22xf32>
      %208 = arith.addf %200, %207 : vector<16x22xf32>
      %c3_94 = arith.constant 3 : index
      %c0_95 = arith.constant 0 : index
      %209 = vector.load %arg6[%c3_94, %c0_95] : memref<22x22xf32, #tpu.memory_space<vmem>>, vector<16x22xf32>
      %c21_i32_96 = arith.constant 21 : i32
      %210 = arith.addi %11, %c21_i32_96 : i32
      %c3_i32_97 = arith.constant 3 : i32
      %211 = arith.addi %210, %c3_i32_97 : i32
      %212 = arith.index_cast %211 : i32 to index
      %213 = memref.load %arg3[%212] : memref<196xf32, #tpu.memory_space<smem>>
      %214 = vector.broadcast %213 : f32 to vector<16x22xf32>
      %215 = arith.mulf %209, %214 : vector<16x22xf32>
      %216 = arith.addf %208, %215 : vector<16x22xf32>
      %c4_98 = arith.constant 4 : index
      %c0_99 = arith.constant 0 : index
      %217 = vector.load %arg6[%c4_98, %c0_99] : memref<22x22xf32, #tpu.memory_space<vmem>>, vector<16x22xf32>
      %c28_i32_100 = arith.constant 28 : i32
      %218 = arith.addi %11, %c28_i32_100 : i32
      %c3_i32_101 = arith.constant 3 : i32
      %219 = arith.addi %218, %c3_i32_101 : i32
      %220 = arith.index_cast %219 : i32 to index
      %221 = memref.load %arg3[%220] : memref<196xf32, #tpu.memory_space<smem>>
      %222 = vector.broadcast %221 : f32 to vector<16x22xf32>
      %223 = arith.mulf %217, %222 : vector<16x22xf32>
      %224 = arith.addf %216, %223 : vector<16x22xf32>
      %c5_102 = arith.constant 5 : index
      %c0_103 = arith.constant 0 : index
      %225 = vector.load %arg6[%c5_102, %c0_103] : memref<22x22xf32, #tpu.memory_space<vmem>>, vector<16x22xf32>
      %c35_i32_104 = arith.constant 35 : i32
      %226 = arith.addi %11, %c35_i32_104 : i32
      %c3_i32_105 = arith.constant 3 : i32
      %227 = arith.addi %226, %c3_i32_105 : i32
      %228 = arith.index_cast %227 : i32 to index
      %229 = memref.load %arg3[%228] : memref<196xf32, #tpu.memory_space<smem>>
      %230 = vector.broadcast %229 : f32 to vector<16x22xf32>
      %231 = arith.mulf %225, %230 : vector<16x22xf32>
      %232 = arith.addf %224, %231 : vector<16x22xf32>
      %c6_106 = arith.constant 6 : index
      %c0_107 = arith.constant 0 : index
      %233 = vector.load %arg6[%c6_106, %c0_107] : memref<22x22xf32, #tpu.memory_space<vmem>>, vector<16x22xf32>
      %c42_i32_108 = arith.constant 42 : i32
      %234 = arith.addi %11, %c42_i32_108 : i32
      %c3_i32_109 = arith.constant 3 : i32
      %235 = arith.addi %234, %c3_i32_109 : i32
      %236 = arith.index_cast %235 : i32 to index
      %237 = memref.load %arg3[%236] : memref<196xf32, #tpu.memory_space<smem>>
      %238 = vector.broadcast %237 : f32 to vector<16x22xf32>
      %239 = arith.mulf %233, %238 : vector<16x22xf32>
      %240 = arith.addf %232, %239 : vector<16x22xf32>
      %241 = vector.extract_strided_slice %240 {offsets = [0, 3], sizes = [16, 16], strides = [1, 1]} : vector<16x22xf32> to vector<16x16xf32>
      %242 = arith.addf %186, %241 : vector<16x16xf32>
      %c0_110 = arith.constant 0 : index
      %c0_111 = arith.constant 0 : index
      %243 = vector.load %arg6[%c0_110, %c0_111] : memref<22x22xf32, #tpu.memory_space<vmem>>, vector<16x22xf32>
      %c4_i32_112 = arith.constant 4 : i32
      %244 = arith.addi %11, %c4_i32_112 : i32
      %245 = arith.index_cast %244 : i32 to index
      %246 = memref.load %arg3[%245] : memref<196xf32, #tpu.memory_space<smem>>
      %247 = vector.broadcast %246 : f32 to vector<16x22xf32>
      %248 = arith.mulf %243, %247 : vector<16x22xf32>
      %c1_113 = arith.constant 1 : index
      %c0_114 = arith.constant 0 : index
      %249 = vector.load %arg6[%c1_113, %c0_114] : memref<22x22xf32, #tpu.memory_space<vmem>>, vector<16x22xf32>
      %c7_i32_115 = arith.constant 7 : i32
      %250 = arith.addi %11, %c7_i32_115 : i32
      %c4_i32_116 = arith.constant 4 : i32
      %251 = arith.addi %250, %c4_i32_116 : i32
      %252 = arith.index_cast %251 : i32 to index
      %253 = memref.load %arg3[%252] : memref<196xf32, #tpu.memory_space<smem>>
      %254 = vector.broadcast %253 : f32 to vector<16x22xf32>
      %255 = arith.mulf %249, %254 : vector<16x22xf32>
      %256 = arith.addf %248, %255 : vector<16x22xf32>
      %c2_117 = arith.constant 2 : index
      %c0_118 = arith.constant 0 : index
      %257 = vector.load %arg6[%c2_117, %c0_118] : memref<22x22xf32, #tpu.memory_space<vmem>>, vector<16x22xf32>
      %c14_i32_119 = arith.constant 14 : i32
      %258 = arith.addi %11, %c14_i32_119 : i32
      %c4_i32_120 = arith.constant 4 : i32
      %259 = arith.addi %258, %c4_i32_120 : i32
      %260 = arith.index_cast %259 : i32 to index
      %261 = memref.load %arg3[%260] : memref<196xf32, #tpu.memory_space<smem>>
      %262 = vector.broadcast %261 : f32 to vector<16x22xf32>
      %263 = arith.mulf %257, %262 : vector<16x22xf32>
      %264 = arith.addf %256, %263 : vector<16x22xf32>
      %c3_121 = arith.constant 3 : index
      %c0_122 = arith.constant 0 : index
      %265 = vector.load %arg6[%c3_121, %c0_122] : memref<22x22xf32, #tpu.memory_space<vmem>>, vector<16x22xf32>
      %c21_i32_123 = arith.constant 21 : i32
      %266 = arith.addi %11, %c21_i32_123 : i32
      %c4_i32_124 = arith.constant 4 : i32
      %267 = arith.addi %266, %c4_i32_124 : i32
      %268 = arith.index_cast %267 : i32 to index
      %269 = memref.load %arg3[%268] : memref<196xf32, #tpu.memory_space<smem>>
      %270 = vector.broadcast %269 : f32 to vector<16x22xf32>
      %271 = arith.mulf %265, %270 : vector<16x22xf32>
      %272 = arith.addf %264, %271 : vector<16x22xf32>
      %c4_125 = arith.constant 4 : index
      %c0_126 = arith.constant 0 : index
      %273 = vector.load %arg6[%c4_125, %c0_126] : memref<22x22xf32, #tpu.memory_space<vmem>>, vector<16x22xf32>
      %c28_i32_127 = arith.constant 28 : i32
      %274 = arith.addi %11, %c28_i32_127 : i32
      %c4_i32_128 = arith.constant 4 : i32
      %275 = arith.addi %274, %c4_i32_128 : i32
      %276 = arith.index_cast %275 : i32 to index
      %277 = memref.load %arg3[%276] : memref<196xf32, #tpu.memory_space<smem>>
      %278 = vector.broadcast %277 : f32 to vector<16x22xf32>
      %279 = arith.mulf %273, %278 : vector<16x22xf32>
      %280 = arith.addf %272, %279 : vector<16x22xf32>
      %c5_129 = arith.constant 5 : index
      %c0_130 = arith.constant 0 : index
      %281 = vector.load %arg6[%c5_129, %c0_130] : memref<22x22xf32, #tpu.memory_space<vmem>>, vector<16x22xf32>
      %c35_i32_131 = arith.constant 35 : i32
      %282 = arith.addi %11, %c35_i32_131 : i32
      %c4_i32_132 = arith.constant 4 : i32
      %283 = arith.addi %282, %c4_i32_132 : i32
      %284 = arith.index_cast %283 : i32 to index
      %285 = memref.load %arg3[%284] : memref<196xf32, #tpu.memory_space<smem>>
      %286 = vector.broadcast %285 : f32 to vector<16x22xf32>
      %287 = arith.mulf %281, %286 : vector<16x22xf32>
      %288 = arith.addf %280, %287 : vector<16x22xf32>
      %c6_133 = arith.constant 6 : index
      %c0_134 = arith.constant 0 : index
      %289 = vector.load %arg6[%c6_133, %c0_134] : memref<22x22xf32, #tpu.memory_space<vmem>>, vector<16x22xf32>
      %c42_i32_135 = arith.constant 42 : i32
      %290 = arith.addi %11, %c42_i32_135 : i32
      %c4_i32_136 = arith.constant 4 : i32
      %291 = arith.addi %290, %c4_i32_136 : i32
      %292 = arith.index_cast %291 : i32 to index
      %293 = memref.load %arg3[%292] : memref<196xf32, #tpu.memory_space<smem>>
      %294 = vector.broadcast %293 : f32 to vector<16x22xf32>
      %295 = arith.mulf %289, %294 : vector<16x22xf32>
      %296 = arith.addf %288, %295 : vector<16x22xf32>
      %297 = vector.extract_strided_slice %296 {offsets = [0, 4], sizes = [16, 16], strides = [1, 1]} : vector<16x22xf32> to vector<16x16xf32>
      %298 = arith.addf %242, %297 : vector<16x16xf32>
      %c0_137 = arith.constant 0 : index
      %c0_138 = arith.constant 0 : index
      %299 = vector.load %arg6[%c0_137, %c0_138] : memref<22x22xf32, #tpu.memory_space<vmem>>, vector<16x22xf32>
      %c5_i32 = arith.constant 5 : i32
      %300 = arith.addi %11, %c5_i32 : i32
      %301 = arith.index_cast %300 : i32 to index
      %302 = memref.load %arg3[%301] : memref<196xf32, #tpu.memory_space<smem>>
      %303 = vector.broadcast %302 : f32 to vector<16x22xf32>
      %304 = arith.mulf %299, %303 : vector<16x22xf32>
      %c1_139 = arith.constant 1 : index
      %c0_140 = arith.constant 0 : index
      %305 = vector.load %arg6[%c1_139, %c0_140] : memref<22x22xf32, #tpu.memory_space<vmem>>, vector<16x22xf32>
      %c7_i32_141 = arith.constant 7 : i32
      %306 = arith.addi %11, %c7_i32_141 : i32
      %c5_i32_142 = arith.constant 5 : i32
      %307 = arith.addi %306, %c5_i32_142 : i32
      %308 = arith.index_cast %307 : i32 to index
      %309 = memref.load %arg3[%308] : memref<196xf32, #tpu.memory_space<smem>>
      %310 = vector.broadcast %309 : f32 to vector<16x22xf32>
      %311 = arith.mulf %305, %310 : vector<16x22xf32>
      %312 = arith.addf %304, %311 : vector<16x22xf32>
      %c2_143 = arith.constant 2 : index
      %c0_144 = arith.constant 0 : index
      %313 = vector.load %arg6[%c2_143, %c0_144] : memref<22x22xf32, #tpu.memory_space<vmem>>, vector<16x22xf32>
      %c14_i32_145 = arith.constant 14 : i32
      %314 = arith.addi %11, %c14_i32_145 : i32
      %c5_i32_146 = arith.constant 5 : i32
      %315 = arith.addi %314, %c5_i32_146 : i32
      %316 = arith.index_cast %315 : i32 to index
      %317 = memref.load %arg3[%316] : memref<196xf32, #tpu.memory_space<smem>>
      %318 = vector.broadcast %317 : f32 to vector<16x22xf32>
      %319 = arith.mulf %313, %318 : vector<16x22xf32>
      %320 = arith.addf %312, %319 : vector<16x22xf32>
      %c3_147 = arith.constant 3 : index
      %c0_148 = arith.constant 0 : index
      %321 = vector.load %arg6[%c3_147, %c0_148] : memref<22x22xf32, #tpu.memory_space<vmem>>, vector<16x22xf32>
      %c21_i32_149 = arith.constant 21 : i32
      %322 = arith.addi %11, %c21_i32_149 : i32
      %c5_i32_150 = arith.constant 5 : i32
      %323 = arith.addi %322, %c5_i32_150 : i32
      %324 = arith.index_cast %323 : i32 to index
      %325 = memref.load %arg3[%324] : memref<196xf32, #tpu.memory_space<smem>>
      %326 = vector.broadcast %325 : f32 to vector<16x22xf32>
      %327 = arith.mulf %321, %326 : vector<16x22xf32>
      %328 = arith.addf %320, %327 : vector<16x22xf32>
      %c4_151 = arith.constant 4 : index
      %c0_152 = arith.constant 0 : index
      %329 = vector.load %arg6[%c4_151, %c0_152] : memref<22x22xf32, #tpu.memory_space<vmem>>, vector<16x22xf32>
      %c28_i32_153 = arith.constant 28 : i32
      %330 = arith.addi %11, %c28_i32_153 : i32
      %c5_i32_154 = arith.constant 5 : i32
      %331 = arith.addi %330, %c5_i32_154 : i32
      %332 = arith.index_cast %331 : i32 to index
      %333 = memref.load %arg3[%332] : memref<196xf32, #tpu.memory_space<smem>>
      %334 = vector.broadcast %333 : f32 to vector<16x22xf32>
      %335 = arith.mulf %329, %334 : vector<16x22xf32>
      %336 = arith.addf %328, %335 : vector<16x22xf32>
      %c5_155 = arith.constant 5 : index
      %c0_156 = arith.constant 0 : index
      %337 = vector.load %arg6[%c5_155, %c0_156] : memref<22x22xf32, #tpu.memory_space<vmem>>, vector<16x22xf32>
      %c35_i32_157 = arith.constant 35 : i32
      %338 = arith.addi %11, %c35_i32_157 : i32
      %c5_i32_158 = arith.constant 5 : i32
      %339 = arith.addi %338, %c5_i32_158 : i32
      %340 = arith.index_cast %339 : i32 to index
      %341 = memref.load %arg3[%340] : memref<196xf32, #tpu.memory_space<smem>>
      %342 = vector.broadcast %341 : f32 to vector<16x22xf32>
      %343 = arith.mulf %337, %342 : vector<16x22xf32>
      %344 = arith.addf %336, %343 : vector<16x22xf32>
      %c6_159 = arith.constant 6 : index
      %c0_160 = arith.constant 0 : index
      %345 = vector.load %arg6[%c6_159, %c0_160] : memref<22x22xf32, #tpu.memory_space<vmem>>, vector<16x22xf32>
      %c42_i32_161 = arith.constant 42 : i32
      %346 = arith.addi %11, %c42_i32_161 : i32
      %c5_i32_162 = arith.constant 5 : i32
      %347 = arith.addi %346, %c5_i32_162 : i32
      %348 = arith.index_cast %347 : i32 to index
      %349 = memref.load %arg3[%348] : memref<196xf32, #tpu.memory_space<smem>>
      %350 = vector.broadcast %349 : f32 to vector<16x22xf32>
      %351 = arith.mulf %345, %350 : vector<16x22xf32>
      %352 = arith.addf %344, %351 : vector<16x22xf32>
      %353 = vector.extract_strided_slice %352 {offsets = [0, 5], sizes = [16, 16], strides = [1, 1]} : vector<16x22xf32> to vector<16x16xf32>
      %354 = arith.addf %298, %353 : vector<16x16xf32>
      %c0_163 = arith.constant 0 : index
      %c0_164 = arith.constant 0 : index
      %355 = vector.load %arg6[%c0_163, %c0_164] : memref<22x22xf32, #tpu.memory_space<vmem>>, vector<16x22xf32>
      %c6_i32 = arith.constant 6 : i32
      %356 = arith.addi %11, %c6_i32 : i32
      %357 = arith.index_cast %356 : i32 to index
      %358 = memref.load %arg3[%357] : memref<196xf32, #tpu.memory_space<smem>>
      %359 = vector.broadcast %358 : f32 to vector<16x22xf32>
      %360 = arith.mulf %355, %359 : vector<16x22xf32>
      %c1_165 = arith.constant 1 : index
      %c0_166 = arith.constant 0 : index
      %361 = vector.load %arg6[%c1_165, %c0_166] : memref<22x22xf32, #tpu.memory_space<vmem>>, vector<16x22xf32>
      %c7_i32_167 = arith.constant 7 : i32
      %362 = arith.addi %11, %c7_i32_167 : i32
      %c6_i32_168 = arith.constant 6 : i32
      %363 = arith.addi %362, %c6_i32_168 : i32
      %364 = arith.index_cast %363 : i32 to index
      %365 = memref.load %arg3[%364] : memref<196xf32, #tpu.memory_space<smem>>
      %366 = vector.broadcast %365 : f32 to vector<16x22xf32>
      %367 = arith.mulf %361, %366 : vector<16x22xf32>
      %368 = arith.addf %360, %367 : vector<16x22xf32>
      %c2_169 = arith.constant 2 : index
      %c0_170 = arith.constant 0 : index
      %369 = vector.load %arg6[%c2_169, %c0_170] : memref<22x22xf32, #tpu.memory_space<vmem>>, vector<16x22xf32>
      %c14_i32_171 = arith.constant 14 : i32
      %370 = arith.addi %11, %c14_i32_171 : i32
      %c6_i32_172 = arith.constant 6 : i32
      %371 = arith.addi %370, %c6_i32_172 : i32
      %372 = arith.index_cast %371 : i32 to index
      %373 = memref.load %arg3[%372] : memref<196xf32, #tpu.memory_space<smem>>
      %374 = vector.broadcast %373 : f32 to vector<16x22xf32>
      %375 = arith.mulf %369, %374 : vector<16x22xf32>
      %376 = arith.addf %368, %375 : vector<16x22xf32>
      %c3_173 = arith.constant 3 : index
      %c0_174 = arith.constant 0 : index
      %377 = vector.load %arg6[%c3_173, %c0_174] : memref<22x22xf32, #tpu.memory_space<vmem>>, vector<16x22xf32>
      %c21_i32_175 = arith.constant 21 : i32
      %378 = arith.addi %11, %c21_i32_175 : i32
      %c6_i32_176 = arith.constant 6 : i32
      %379 = arith.addi %378, %c6_i32_176 : i32
      %380 = arith.index_cast %379 : i32 to index
      %381 = memref.load %arg3[%380] : memref<196xf32, #tpu.memory_space<smem>>
      %382 = vector.broadcast %381 : f32 to vector<16x22xf32>
      %383 = arith.mulf %377, %382 : vector<16x22xf32>
      %384 = arith.addf %376, %383 : vector<16x22xf32>
      %c4_177 = arith.constant 4 : index
      %c0_178 = arith.constant 0 : index
      %385 = vector.load %arg6[%c4_177, %c0_178] : memref<22x22xf32, #tpu.memory_space<vmem>>, vector<16x22xf32>
      %c28_i32_179 = arith.constant 28 : i32
      %386 = arith.addi %11, %c28_i32_179 : i32
      %c6_i32_180 = arith.constant 6 : i32
      %387 = arith.addi %386, %c6_i32_180 : i32
      %388 = arith.index_cast %387 : i32 to index
      %389 = memref.load %arg3[%388] : memref<196xf32, #tpu.memory_space<smem>>
      %390 = vector.broadcast %389 : f32 to vector<16x22xf32>
      %391 = arith.mulf %385, %390 : vector<16x22xf32>
      %392 = arith.addf %384, %391 : vector<16x22xf32>
      %c5_181 = arith.constant 5 : index
      %c0_182 = arith.constant 0 : index
      %393 = vector.load %arg6[%c5_181, %c0_182] : memref<22x22xf32, #tpu.memory_space<vmem>>, vector<16x22xf32>
      %c35_i32_183 = arith.constant 35 : i32
      %394 = arith.addi %11, %c35_i32_183 : i32
      %c6_i32_184 = arith.constant 6 : i32
      %395 = arith.addi %394, %c6_i32_184 : i32
      %396 = arith.index_cast %395 : i32 to index
      %397 = memref.load %arg3[%396] : memref<196xf32, #tpu.memory_space<smem>>
      %398 = vector.broadcast %397 : f32 to vector<16x22xf32>
      %399 = arith.mulf %393, %398 : vector<16x22xf32>
      %400 = arith.addf %392, %399 : vector<16x22xf32>
      %c6_185 = arith.constant 6 : index
      %c0_186 = arith.constant 0 : index
      %401 = vector.load %arg6[%c6_185, %c0_186] : memref<22x22xf32, #tpu.memory_space<vmem>>, vector<16x22xf32>
      %c42_i32_187 = arith.constant 42 : i32
      %402 = arith.addi %11, %c42_i32_187 : i32
      %c6_i32_188 = arith.constant 6 : i32
      %403 = arith.addi %402, %c6_i32_188 : i32
      %404 = arith.index_cast %403 : i32 to index
      %405 = memref.load %arg3[%404] : memref<196xf32, #tpu.memory_space<smem>>
      %406 = vector.broadcast %405 : f32 to vector<16x22xf32>
      %407 = arith.mulf %401, %406 : vector<16x22xf32>
      %408 = arith.addf %400, %407 : vector<16x22xf32>
      %409 = vector.extract_strided_slice %408 {offsets = [0, 6], sizes = [16, 16], strides = [1, 1]} : vector<16x22xf32> to vector<16x16xf32>
      %410 = arith.addf %354, %409 : vector<16x16xf32>
      %c0_189 = arith.constant 0 : index
      %411 = arith.index_cast %arg7 : i32 to index
      %c0_190 = arith.constant 0 : index
      %c0_191 = arith.constant 0 : index
      %412 = vector.load %arg5[%c0_189, %411, %c0_190, %c0_191] : memref<1x4x16x16xf32, #tpu.memory_space<vmem>>, vector<1x1x16x16xf32>
      %413 = vector.shape_cast %412 : vector<1x1x16x16xf32> to vector<16x16xf32>
      %414 = vector.shape_cast %410 : vector<16x16xf32> to vector<1x1x16x16xf32>
      tpu.vector_store %arg5[%c0_189, %411, %c0_190, %c0_191], %414 {strides = array<i32>} : memref<1x4x16x16xf32, #tpu.memory_space<vmem>>, vector<1x1x16x16xf32>,
    }
    %c4_i32_8 = arith.constant 4 : i32
    return
  }
  func.func @transform_0(%arg0: i32, %arg1: i32) -> (i32, i32, i32, i32) {
    %c0_i32 = arith.constant 0 : i32
    %c0_i32_0 = arith.constant 0 : i32
    %c0_i32_1 = arith.constant 0 : i32
    return %arg0, %arg1, %c0_i32, %c0_i32_0 : i32, i32, i32, i32
  }
  func.func @transform_1(%arg0: i32, %arg1: i32) -> i32 {
    %c0_i32 = arith.constant 0 : i32
    %c0_i32_0 = arith.constant 0 : i32
    return %c0_i32 : i32
  }
  func.func @transform_2(%arg0: i32, %arg1: i32) -> i32 {
    %c0_i32 = arith.constant 0 : i32
    %c0_i32_0 = arith.constant 0 : i32
    return %c0_i32 : i32
  }
  func.func @transform_3(%arg0: i32, %arg1: i32) -> (i32, i32, i32, i32) {
    %c0_i32 = arith.constant 0 : i32
    %c0_i32_0 = arith.constant 0 : i32
    %c0_i32_1 = arith.constant 0 : i32
    return %arg0, %arg1, %c0_i32, %c0_i32_0 : i32, i32, i32, i32
  }
}

</mosaic_0001>

<llo_original>
// kernel: squeeze.1
$region0: #{squeeze.1}
  %s0 = inlined_call_operand.vmem [shape: f32[4,1,7,7], index: 0, kind: input, shape index: {}]
  %s1 = inlined_call_operand.vmem [shape: f32[196], index: 1, kind: output, shape index: {}]
  $region1: #{squeeze.1} parent=0
    #allocation0 [shape = 'u8[4096]{0}', space=vmem, size = 0x1000, scoped, tag = 'scoped mem for output reshape']
    %v2 = vld [vmem:[%s0] sm:$0x1]
    %vm3 = vcmask 56320
    %4 = vst.msk [vmem:[#allocation0] sm:$0x1] %vm3, %v2
    %s5 = scalar_lea.vmem %s0, 20
    %v6 = vld [vmem:[%s5] sm:$0x1]
    %s7 = scalar_lea.vmem %s0, 20
    %v8 = vld [vmem:[%s7] sm:$0x1]
    %vm9 = vcmask 15360
    %v10 = vsel %vm9, %v8, %v6
    %11 = vrot.lane.b32.xlu0 %v10, 126
    %v12 = vpop.permute.xlu0 %11
    %vm13 = vcmask 39936
    %s14 = scalar_lea.vmem [#allocation0], 1
    %15 = vst.msk [vmem:[%s14] sm:$0x1] %vm13, %v12
    %vm16 = vcmask 1048560
    %17 = vst.msk [vmem:[#allocation0] sm:$0x1] %vm16, %v12
    %s18 = scalar_lea.vmem %s0, 19
    %v19 = vld [vmem:[%s18] sm:$0x1]
    %20 = vrot.lane.b32.xlu0 %v19, 119
    %v21 = vpop.permute.xlu0 %20
    %vm22 = vcmask 1032120
    %23 = vst.msk [vmem:[#allocation0] sm:$0x1] %vm22, %v21
    %s24 = scalar_lea.vmem %s0, 18
    %v25 = vld [vmem:[%s24] sm:$0x1]
    %26 = vrot.lane.b32.xlu0 %v25, 112
    %v27 = vpop.permute.xlu0 %26
    %vm28 = vcmask 974720
    %29 = vst.msk [vmem:[#allocation0] sm:$0x1] %vm28, %v27
    %s30 = scalar_lea.vmem %s0, 17
    %v31 = vld [vmem:[%s30] sm:$0x1]
    %32 = vrot.lane.b32.xlu0 %v31, 105
    %v33 = vpop.permute.xlu0 %32
    %vm34 = vcmask 917320
    %35 = vst.msk [vmem:[#allocation0] sm:$0x1] %vm34, %v33
    %s36 = scalar_lea.vmem %s0, 16
    %v37 = vld [vmem:[%s36] sm:$0x1]
    %38 = vrot.lane.b32.xlu0 %v37, 98
    %v39 = vpop.permute.xlu0 %38
    %vm40 = vcmask 859920
    %41 = vst.msk [vmem:[#allocation0] sm:$0x1] %vm40, %v39
    %s42 = scalar_lea.vmem %s0, 14
    %v43 = vld [vmem:[%s42] sm:$0x1]
    %44 = vrot.lane.b32.xlu0 %v43, 91
    %v45 = vpop.permute.xlu0 %44
    %vm46 = vcmask 802520
    %47 = vst.msk [vmem:[#allocation0] sm:$0x1] %vm46, %v45
    %s48 = scalar_lea.vmem %s0, 13
    %v49 = vld [vmem:[%s48] sm:$0x1]
    %50 = vrot.lane.b32.xlu0 %v49, 84
    %v51 = vpop.permute.xlu0 %50
    %vm52 = vcmask 745120
    %53 = vst.msk [vmem:[#allocation0] sm:$0x1] %vm52, %v51
    %s54 = scalar_lea.vmem %s0, 12
    %v55 = vld [vmem:[%s54] sm:$0x1]
    %56 = vrot.lane.b32.xlu0 %v55, 77
    %v57 = vpop.permute.xlu0 %56
    %vm58 = vcmask 687720
    %59 = vst.msk [vmem:[#allocation0] sm:$0x1] %vm58, %v57
    %s60 = scalar_lea.vmem %s0, 11
    %v61 = vld [vmem:[%s60] sm:$0x1]
    %62 = vrot.lane.b32.xlu0 %v61, 70
    %v63 = vpop.permute.xlu0 %62
    %vm64 = vcmask 630320
    %65 = vst.msk [vmem:[#allocation0] sm:$0x1] %vm64, %v63
    %s66 = scalar_lea.vmem %s0, 10
    %v67 = vld [vmem:[%s66] sm:$0x1]
    %68 = vrot.lane.b32.xlu0 %v67, 63
    %v69 = vpop.permute.xlu0 %68
    %vm70 = vcmask 572920
    %71 = vst.msk [vmem:[#allocation0] sm:$0x1] %vm70, %v69
    %s72 = scalar_lea.vmem %s0, 30
    %v73 = vld [vmem:[%s72] sm:$0x1]
    %74 = vrot.lane.b32.xlu0 %v73, 61
    %v75 = vpop.permute.xlu0 %74
    %vm76 = vcmask 556520
    %s77 = scalar_lea.vmem [#allocation0], 1
    %78 = vst.msk [vmem:[%s77] sm:$0x1] %vm76, %v75
    %s79 = scalar_lea.vmem %s0, 9
    %v80 = vld [vmem:[%s79] sm:$0x1]
    %81 = vrot.lane.b32.xlu0 %v80, 56
    %v82 = vpop.permute.xlu0 %81
    %vm83 = vcmask 515520
    %84 = vst.msk [vmem:[#allocation0] sm:$0x1] %vm83, %v82
    %s85 = scalar_lea.vmem %s0, 29
    %v86 = vld [vmem:[%s85] sm:$0x1]
    %87 = vrot.lane.b32.xlu0 %v86, 54
    %v88 = vpop.permute.xlu0 %87
    %vm89 = vcmask 499120
    %s90 = scalar_lea.vmem [#allocation0], 1
    %91 = vst.msk [vmem:[%s90] sm:$0x1] %vm89, %v88
    %s92 = scalar_lea.vmem %s0, 8
    %v93 = vld [vmem:[%s92] sm:$0x1]
    %94 = vrot.lane.b32.xlu0 %v93, 49
    %v95 = vpop.permute.xlu0 %94
    %vm96 = vcmask 458120
    %97 = vst.msk [vmem:[#allocation0] sm:$0x1] %vm96, %v95
    %s98 = scalar_lea.vmem %s0, 28
    %v99 = vld [vmem:[%s98] sm:$0x1]
    %100 = vrot.lane.b32.xlu0 %v99, 47
    %v101 = vpop.permute.xlu0 %100
    %vm102 = vcmask 441720
    %s103 = scalar_lea.vmem [#allocation0], 1
    %104 = vst.msk [vmem:[%s103] sm:$0x1] %vm102, %v101
    %s105 = scalar_lea.vmem %s0, 6
    %v106 = vld [vmem:[%s105] sm:$0x1]
    %107 = vrot.lane.b32.xlu0 %v106, 42
    %v108 = vpop.permute.xlu0 %107
    %vm109 = vcmask 400720
    %110 = vst.msk [vmem:[#allocation0] sm:$0x1] %vm109, %v108
    %s111 = scalar_lea.vmem %s0, 27
    %v112 = vld [vmem:[%s111] sm:$0x1]
    %113 = vrot.lane.b32.xlu0 %v112, 40
    %v114 = vpop.permute.xlu0 %113
    %vm115 = vcmask 384320
    %s116 = scalar_lea.vmem [#allocation0], 1
    %117 = vst.msk [vmem:[%s116] sm:$0x1] %vm115, %v114
    %s118 = scalar_lea.vmem %s0, 5
    %v119 = vld [vmem:[%s118] sm:$0x1]
    %120 = vrot.lane.b32.xlu0 %v119, 35
    %v121 = vpop.permute.xlu0 %120
    %vm122 = vcmask 343320
    %123 = vst.msk [vmem:[#allocation0] sm:$0x1] %vm122, %v121
    %s124 = scalar_lea.vmem %s0, 26
    %v125 = vld [vmem:[%s124] sm:$0x1]
    %126 = vrot.lane.b32.xlu0 %v125, 33
    %v127 = vpop.permute.xlu0 %126
    %vm128 = vcmask 326920
    %s129 = scalar_lea.vmem [#allocation0], 1
    %130 = vst.msk [vmem:[%s129] sm:$0x1] %vm128, %v127
    %s131 = scalar_lea.vmem %s0, 4
    %v132 = vld [vmem:[%s131] sm:$0x1]
    %133 = vrot.lane.b32.xlu0 %v132, 28
    %v134 = vpop.permute.xlu0 %133
    %vm135 = vcmask 285920
    %136 = vst.msk [vmem:[#allocation0] sm:$0x1] %vm135, %v134
    %s137 = scalar_lea.vmem %s0, 25
    %v138 = vld [vmem:[%s137] sm:$0x1]
    %139 = vrot.lane.b32.xlu0 %v138, 26
    %v140 = vpop.permute.xlu0 %139
    %vm141 = vcmask 269520
    %s142 = scalar_lea.vmem [#allocation0], 1
    %143 = vst.msk [vmem:[%s142] sm:$0x1] %vm141, %v140
    %s144 = scalar_lea.vmem %s0, 3
    %v145 = vld [vmem:[%s144] sm:$0x1]
    %146 = vrot.lane.b32.xlu0 %v145, 21
    %v147 = vpop.permute.xlu0 %146
    %vm148 = vcmask 228520
    %149 = vst.msk [vmem:[#allocation0] sm:$0x1] %vm148, %v147
    %s150 = scalar_lea.vmem %s0, 24
    %v151 = vld [vmem:[%s150] sm:$0x1]
    %152 = vrot.lane.b32.xlu0 %v151, 19
    %v153 = vpop.permute.xlu0 %152
    %vm154 = vcmask 212120
    %s155 = scalar_lea.vmem [#allocation0], 1
    %156 = vst.msk [vmem:[%s155] sm:$0x1] %vm154, %v153
    %s157 = scalar_lea.vmem %s0, 2
    %v158 = vld [vmem:[%s157] sm:$0x1]
    %159 = vrot.lane.b32.xlu0 %v158, 14
    %v160 = vpop.permute.xlu0 %159
    %vm161 = vcmask 171120
    %162 = vst.msk [vmem:[#allocation0] sm:$0x1] %vm161, %v160
    %s163 = scalar_lea.vmem %s0, 22
    %v164 = vld [vmem:[%s163] sm:$0x1]
    %165 = vrot.lane.b32.xlu0 %v164, 12
    %v166 = vpop.permute.xlu0 %165
    %vm167 = vcmask 154720
    %s168 = scalar_lea.vmem [#allocation0], 1
    %169 = vst.msk [vmem:[%s168] sm:$0x1] %vm167, %v166
    %s170 = scalar_lea.vmem %s0, 1
    %v171 = vld [vmem:[%s170] sm:$0x1]
    %172 = vrot.lane.b32.xlu0 %v171, 7
    %v173 = vpop.permute.xlu0 %172
    %vm174 = vcmask 113720
    %175 = vst.msk [vmem:[#allocation0] sm:$0x1] %vm174, %v173
    %s176 = scalar_lea.vmem %s0, 21
    %v177 = vld [vmem:[%s176] sm:$0x1]
    %178 = vrot.lane.b32.xlu0 %v177, 5
    %v179 = vpop.permute.xlu0 %178
    %vm180 = vcmask 97320
    %s181 = scalar_lea.vmem [#allocation0], 1
    %182 = vst.msk [vmem:[%s181] sm:$0x1] %vm180, %v179
    %s184 = sshllo.u32 0, 2
    %v186 = vld [vmem:[#allocation0] sm:%s184]
    %s187 = sshllo.u32 0, 2
    %188 = vst [vmem:[%s1] sm:%s187] %v186

// kernel: _rep_dw_conv_m.1
$region0: #{_rep_dw_conv_m.1}
  #allocation0 [shape = 'u32[]', space=smem, size = 0x4, offset = 0x4, fixed_abs, tag = 'smem constant byte address 0x4 - core index']
  #allocation1 [shape = 'u32[144,128]{1,0:T(1,128)}', space=vmem, size = 0x12000, scoped, tag = 'internal scratch']
  #allocation2 [shape = 'f32[22,22]{1,0:T(8,128)}', space=vmem, size = 0x3000, scoped, tag = 'scratch operand']
  %s0 = inlined_call_operand.vmem [shape: f32[2,4,16,16], index: 0, kind: input, shape index: {}]
  %s1 = inlined_call_operand.vmem [shape: f32[196], index: 1, kind: input, shape index: {}]
  %s2 = inlined_call_operand.vmem [shape: f32[4], index: 2, kind: input, shape index: {}]
  %s3 = inlined_call_operand.hbm [shape: f32[2,4,16,16], index: 3, kind: output, shape index: {}]
  %s4 = sld [smem:[#allocation0]]
  $region60: #{_rep_dw_conv_m.1} parent=0
    _
  %s6 = ssub.s32 1, %s4
  %s7 = scalar_select 0, %s6, %s4
  $region1: #{_rep_dw_conv_m.1} parent=0
    #allocation3 [shape = 'u8[1024]{0}', space=smem, size = 0x400, scoped, tag = 'input window, operand 1, single buffered']
    #allocation4 [shape = 's32[2]{0}', space=sflag, size = 0x8, scoped, tag = 'scoped memory for _rep_dw_conv_m.1']
    #allocation5 [shape = 's32[2]{0}', space=sflag, size = 0x8, scoped, tag = 'scoped memory for _rep_dw_conv_m.1']
    #allocation6 [shape = 'u8[512]{0}', space=smem, size = 0x200, scoped, tag = 'input window, operand 2, single buffered']
    #allocation7 [shape = 's32[1]{0}', space=sflag, size = 0x4, scoped, tag = 'scoped memory for _rep_dw_conv_m.1']
    #allocation8 [shape = 'u8[65536]{0}', space=vmem, size = 0x10000, scoped, tag = 'output window, operand 0']
    %8 = vsyncpa [#allocation5], 0
    %9 = vsyncpa [#allocation7], 0
    %10 = vsyncpa [#allocation4], 0
    %s11 = scalar_lea.sflag [#allocation4], 1
    %12 = vsyncpa %s11, 0
    loop: start=0, step=1, limit=4
    $region2: #{_rep_dw_conv_m.1} parent=1 // loop_pre_header
      _
    $region3: #{_rep_dw_conv_m.1} parent=1 // loop_header
      %s14 = sphi 0, %s18
      %p15 = scmp.ge.s32.totalorder %s14, 4
      %s21 = sphi 0, %s33
      %s22 = sphi 0, %s29
      %s23 = sphi 0, %s21
      %s24 = sphi 0, %s22
      %s25 = sphi 0, %s23
      %s26 = sphi 0, %s24
      %s38 = sphi 0, %s40
      %s41 = sphi 0, %s38
      %s42 = sphi 0, %s41
      %s58 = sphi 0, %s42
      %s62 = sphi 0, %s62
      %s64 = sphi 0, %s62
      %s65 = sphi 0, %s64
      %s79 = sphi 0, %s65
      %s83 = sphi 0, %s83
      %s85 = sphi 0, %s83
      %s86 = sphi 0, %s85
      %s100 = sphi 0, %s86
      %s108 = sphi 0, %s110
      %s111 = sphi 0, %s108
      %s112 = sphi 0, %s111
      %s128 = sphi 0, %s112
    $region4: #{_rep_dw_conv_m.1} parent=1 // loop_header_branch
      %17 = sbr.rel (%p15) target = $region8
    $region5: #{_rep_dw_conv_m.1} parent=1 // loop_body
      %s19 = ssub.s32 %s14, 1
      %s20 = ssub.s32 %s14, 2
      %s27 = sadd.s32 1, %s22
      %p28 = scmp.ge.s32.totalorder %s27, 1
      %s29 = scalar_select %p28, 0, %s27
      %s30 = sadd.s32 1, %s21
      %s31 = scalar_select %p28, %s30, %s21
      %p32 = scmp.ge.s32.totalorder %s31, 2
      %s33 = scalar_select %p32, 0, %s31
      %s34 = ssub.s32 %s21, %s33
      %s35 = ssub.s32 %s22, %s29
      %s36 = sor.u32 %s34, %s35
      %p37 = scmp.eq.s32.totalorder %s36, 0
      %s39 = sadd.s32 %s38, 1
      %s40 = scalar_select %p37, %s38, %s39
      %p43 = pneg %p37
      %p44 = scmp.eq.s32.totalorder %s14, 1
      %p45 = por %p43, %p44
      %p46 = scmp.ne.s32.totalorder %s38, %s41
      %p47 = scmp.eq.s32.totalorder %s14, 0
      %p48 = por %p46, %p47
      %p49 = scmp.ne.s32.totalorder %s38, %s41
      %p50 = scmp.eq.s32.totalorder %s19, 1
      %p51 = por %p49, %p50
      %p52 = scmp.ne.s32.totalorder %s41, %s42
      %p53 = scmp.eq.s32.totalorder %s19, 0
      %p54 = por %p52, %p53
      %p55 = scmp.ne.s32.totalorder %s41, %s42
      %p56 = scmp.eq.s32.totalorder %s20, 1
      %p57 = por %p55, %p56
      %p59 = scmp.ne.s32.totalorder %s42, %s58
      %p60 = scmp.eq.s32.totalorder %s20, 0
      %p61 = por %p59, %p60
      %s63 = sadd.s32 %s62, 1
      %p66 = scmp.eq.s32.totalorder %s14, 1
      %p67 = scmp.ne.s32.totalorder %s62, %s64
      %p68 = scmp.eq.s32.totalorder %s14, 0
      %p69 = por %p67, %p68
      %p70 = scmp.ne.s32.totalorder %s62, %s64
      %p71 = scmp.eq.s32.totalorder %s19, 1
      %p72 = por %p70, %p71
      %p73 = scmp.ne.s32.totalorder %s64, %s65
      %p74 = scmp.eq.s32.totalorder %s19, 0
      %p75 = por %p73, %p74
      %p76 = scmp.ne.s32.totalorder %s64, %s65
      %p77 = scmp.eq.s32.totalorder %s20, 1
      %p78 = por %p76, %p77
      %p80 = scmp.ne.s32.totalorder %s65, %s79
      %p81 = scmp.eq.s32.totalorder %s20, 0
      %p82 = por %p80, %p81
      %s84 = sadd.s32 %s83, 1
      %p87 = scmp.eq.s32.totalorder %s14, 1
      %p88 = scmp.ne.s32.totalorder %s83, %s85
      %p89 = scmp.eq.s32.totalorder %s14, 0
      %p90 = por %p88, %p89
      %p91 = scmp.ne.s32.totalorder %s83, %s85
      %p92 = scmp.eq.s32.totalorder %s19, 1
      %p93 = por %p91, %p92
      %p94 = scmp.ne.s32.totalorder %s85, %s86
      %p95 = scmp.eq.s32.totalorder %s19, 0
      %p96 = por %p94, %p95
      %p97 = scmp.ne.s32.totalorder %s85, %s86
      %p98 = scmp.eq.s32.totalorder %s20, 1
      %p99 = por %p97, %p98
      %p101 = scmp.ne.s32.totalorder %s86, %s100
      %p102 = scmp.eq.s32.totalorder %s20, 0
      %p103 = por %p101, %p102
      %s104 = ssub.s32 %s21, %s33
      %s105 = ssub.s32 %s22, %s29
      %s106 = sor.u32 %s104, %s105
      %p107 = scmp.eq.s32.totalorder %s106, 0
      %s109 = sadd.s32 %s108, 1
      %s110 = scalar_select %p107, %s108, %s109
      %p113 = pneg %p107
      %p114 = scmp.eq.s32.totalorder %s14, 1
      %p115 = por %p113, %p114
      %p116 = scmp.ne.s32.totalorder %s108, %s111
      %p117 = scmp.eq.s32.totalorder %s14, 0
      %p118 = por %p116, %p117
      %p119 = scmp.ne.s32.totalorder %s108, %s111
      %p120 = scmp.eq.s32.totalorder %s19, 1
      %p121 = por %p119, %p120
      %p122 = scmp.ne.s32.totalorder %s111, %s112
      %p123 = scmp.eq.s32.totalorder %s19, 0
      %p124 = por %p122, %p123
      %p125 = scmp.ne.s32.totalorder %s111, %s112
      %p126 = scmp.eq.s32.totalorder %s20, 1
      %p127 = por %p125, %p126
      %p129 = scmp.ne.s32.totalorder %s112, %s128
      %p130 = scmp.eq.s32.totalorder %s20, 0
      %p131 = por %p129, %p130
      %p132 = scmp.le.s32.totalorder 1, %s14
      %p133 = scmp.lt.s32.totalorder %s14, 3
      %p134 = pnand %p132, %p133
      %p135 = pneg %p134
      // Predicated region
      $region9: #{_rep_dw_conv_m.1} parent=5 // pred_check
        _
      $region10: #{_rep_dw_conv_m.1} parent=5 // pred_check_branch
        %137 = sbr.rel (%p134) target = $region12
      $region11: #{_rep_dw_conv_m.1} parent=5 // pred_region
        %s138 = ssub.s32 %s14, 1
        // Predicated region
        $region13: #{_rep_dw_conv_m.1} parent=11 // pred_check
          %p139 = pneg %p75
        $region14: #{_rep_dw_conv_m.1} parent=11 // pred_check_branch
          %141 = sbr.rel (%p139) target = $region16
        $region15: #{_rep_dw_conv_m.1} parent=11 // pred_region
          %s143 = ssub.s32 32, 32
          %144 = vsyncadd [#allocation5], %s143
          %s146 = sshll.u32 %s1, 4
          %s147 = int_to_ptr.vmem [resolvable:$true] %s146
          %149 = dma.vmem_to_smem %s147, 32, [#allocation3], [#allocation5]
        $region16: #{_rep_dw_conv_m.1} parent=11 // pred_fallthru
          _
        // Predicated region
        $region17: #{_rep_dw_conv_m.1} parent=11 // pred_check
          %p150 = pneg %p96
        $region18: #{_rep_dw_conv_m.1} parent=11 // pred_check_branch
          %152 = sbr.rel (%p150) target = $region20
        $region19: #{_rep_dw_conv_m.1} parent=11 // pred_region
          %s154 = ssub.s32 16, 16
          %155 = vsyncadd [#allocation7], %s154
          %s157 = sshll.u32 %s2, 4
          %s158 = int_to_ptr.vmem [resolvable:$true] %s157
          %160 = dma.vmem_to_smem %s158, 16, [#allocation6], [#allocation7]
        $region20: #{_rep_dw_conv_m.1} parent=11 // pred_fallthru
          _
      $region12: #{_rep_dw_conv_m.1} parent=5 // pred_fallthru
        _
      %p161 = scmp.lt.s32.totalorder %s14, 2
      // Predicated region
      $region21: #{_rep_dw_conv_m.1} parent=5 // pred_check
        %p162 = pneg %p161
      $region22: #{_rep_dw_conv_m.1} parent=5 // pred_check_branch
        %164 = sbr.rel (%p162) target = $region24
      $region23: #{_rep_dw_conv_m.1} parent=5 // pred_region
        // Predicated region
        $region25: #{_rep_dw_conv_m.1} parent=23 // pred_check
          %p165 = pneg %p48
        $region26: #{_rep_dw_conv_m.1} parent=23 // pred_check_branch
          %167 = sbr.rel (%p165) target = $region28
        $region27: #{_rep_dw_conv_m.1} parent=23 // pred_region
          %s168 = smul.u32 4, %s22
          %p169 = scmp.lt.s32.totalorder %s21, 1
          %s170 = scalar_select %p169, %s21, 1
          %p171 = scmp.lt.s32.totalorder %s168, 3
          %s172 = scalar_select %p171, %s168, 3
          %s173 = smul.addr %s172, 2
          %s174 = smul.addr %s170, 8
          %s175 = sadd.s32 %s173, %s174
          %s176 = smul.addr %s175, 8
          %s177 = scalar_lea.vmem %s0, %s176
          %s178 = smul.u32 4, %s22
        $region28: #{_rep_dw_conv_m.1} parent=23 // pred_fallthru
          _
      $region24: #{_rep_dw_conv_m.1} parent=5 // pred_fallthru
        _
      %p179 = scmp.le.s32.totalorder 1, %s14
      %p180 = scmp.lt.s32.totalorder %s14, 3
      %p181 = pnand %p179, %p180
      %p182 = pneg %p181
      // Predicated region
      $region29: #{_rep_dw_conv_m.1} parent=5 // pred_check
        _
      $region30: #{_rep_dw_conv_m.1} parent=5 // pred_check_branch
        %184 = sbr.rel (%p181) target = $region32
      $region31: #{_rep_dw_conv_m.1} parent=5 // pred_region
        %s185 = ssub.s32 %s14, 1
        // Predicated region
        $region33: #{_rep_dw_conv_m.1} parent=31 // pred_check
          %p186 = pneg %p75
        $region34: #{_rep_dw_conv_m.1} parent=31 // pred_check_branch
          %188 = sbr.rel (%p186) target = $region36
        $region35: #{_rep_dw_conv_m.1} parent=31 // pred_region
          %189 = dma.done [#allocation5], 32
        $region36: #{_rep_dw_conv_m.1} parent=31 // pred_fallthru
          _
        // Predicated region
        $region37: #{_rep_dw_conv_m.1} parent=31 // pred_check
          %p190 = pneg %p96
        $region38: #{_rep_dw_conv_m.1} parent=31 // pred_check_branch
          %192 = sbr.rel (%p190) target = $region40
        $region39: #{_rep_dw_conv_m.1} parent=31 // pred_region
          %193 = dma.done [#allocation7], 16
        $region40: #{_rep_dw_conv_m.1} parent=31 // pred_fallthru
          _
        %194 = sfence
        %s195 = smul.u32 4, %s24
        %p196 = scmp.lt.s32.totalorder %s23, 1
        %s197 = scalar_select %p196, %s23, 1
        %p198 = scmp.lt.s32.totalorder %s195, 3
        %s199 = scalar_select %p198, %s195, 3
        %s200 = smul.addr %s199, 2
        %s201 = smul.addr %s197, 8
        %s202 = sadd.s32 %s200, %s201
        %s203 = smul.addr %s202, 8
        %s204 = scalar_lea.vmem %s0, %s203
        %p205 = pneg %p54
        %p206 = pneg %p51
        %p207 = pneg %p75
        %p208 = pneg %p72
        %p209 = pneg %p96
        %p210 = pneg %p93
        %p211 = pneg %p124
        %p212 = pneg %p121
        %s213 = sand.u32 %s111, 1
        %s214 = scalar_lea.sflag [#allocation4], %s213
        %s215 = sand.u32 %s111, 1
        %s216 = smul.addr %s215, 64
        %s217 = scalar_lea.vmem [#allocation8], %s216
        %s218 = smul.u32 4, %s24
        %p219 = scmp.lt.s32.totalorder %s23, 1
        %s220 = scalar_select %p219, %s23, 1
        %p221 = scmp.lt.s32.totalorder %s218, 3
        %s222 = scalar_select %p221, %s218, 3
        %s223 = smul.addr %s222, 2
        %s224 = smul.addr %s220, 8
        %s225 = sadd.s32 %s223, %s224
        %s226 = smul.addr %s225, 8
        %s227 = scalar_lea.vmem %s0, %s226
        %s228 = smul.u32 4, %s24
        %s229 = smul.u32 4, %s24
        %vm230 = vcmask 174080
        %231 = vst.msk [vmem:[#allocation2] sm:$0x7] %vm230, 0.0
        %232 = vst.msk [vmem:[#allocation2 + $0x13] sm:$0x7] %vm230, 0.0
        %vm233 = vcmask 23552
        %234 = vst.msk [vmem:[#allocation2 + $0x3] sm:$0xff] %vm233, 0.0
        %235 = vst.msk [vmem:[#allocation2 + $0xb] sm:$0xff] %vm233, 0.0
        %vm236 = vcmask 179352
        %237 = vst.msk [vmem:[#allocation2 + $0x3] sm:$0xff] %vm236, 0.0
        %238 = vst.msk [vmem:[#allocation2 + $0xb] sm:$0xff] %vm236, 0.0
        loop: start=0, step=1, limit=4
        $region41: #{_rep_dw_conv_m.1} parent=31 // loop_pre_header
          _
        $region42: #{_rep_dw_conv_m.1} parent=31 // loop_header
          %s240 = sphi 0, %s244
          %p241 = scmp.ge.s32.totalorder %s240, 4
        $region43: #{_rep_dw_conv_m.1} parent=31 // loop_header_branch
          %243 = sbr.rel (%p241) target = $region47
        $region44: #{_rep_dw_conv_m.1} parent=31 // loop_body
          %s245 = smul.u32 %s24, 4
          %s246 = sadd.s32 %s245, %s240
          %s247 = smul.u32 %s246, 49
          %s248 = smul.u32 %s240, 16
          %s249 = scalar_lea.vmem %s227, %s248
          %v250 = vld [vmem:[%s249] sm:$0xff]
          %v251 = vld [vmem:[%s249 + $0x8] sm:$0xff]
          %254 = vrot.lane.b32.xlu0 %v250, 3
          %v255 = vpop.permute.xlu0 %254
          %256 = vrot.lane.b32.xlu0 %v251, 3
          %v257 = vpop.permute.xlu0 %256
          %vm260 = vcmask 154648
          %261 = vst.msk [vmem:[#allocation2 + $0x3] sm:$0xff] %vm260, %v255
          %262 = vst.msk [vmem:[#allocation2 + $0xb] sm:$0xff] %vm260, %v257
          %s263 = sld [smem:[#allocation6 + %s246]]
          %v264 = vstv %s263
          %v265 = vld [vmem:[#allocation2] sm:$0xff]
          %v266 = vld [vmem:[#allocation2 + $0x8] sm:$0xff]
          %s267 = sld [smem:[#allocation3 + %s247]]
          %v268 = vstv %s267
          %v269 = vmul.f32 %v265, %v268
          %v270 = vmul.f32 %v266, %v268
          %v271 = vld [vmem:[#allocation2 + $0x1] sm:$0xff]
          %v272 = vld [vmem:[#allocation2 + $0x9] sm:$0xff]
          %s273 = sadd.s32 %s247, 7
          %s274 = sld [smem:[#allocation3 + %s273]]
          %v275 = vstv %s274
          %v276 = vmul.f32 %v271, %v275
          %v277 = vmul.f32 %v272, %v275
          %v278 = vadd.f32 %v269, %v276
          %v279 = vadd.f32 %v270, %v277
          %v280 = vld [vmem:[#allocation2 + $0x2] sm:$0xff]
          %v281 = vld [vmem:[#allocation2 + $0xa] sm:$0xff]
          %s282 = sadd.s32 %s247, 14
          %s283 = sld [smem:[#allocation3 + %s282]]
          %v284 = vstv %s283
          %v285 = vmul.f32 %v280, %v284
          %v286 = vmul.f32 %v281, %v284
          %v287 = vadd.f32 %v278, %v285
          %v288 = vadd.f32 %v279, %v286
          %v289 = vld [vmem:[#allocation2 + $0x3] sm:$0xff]
          %v290 = vld [vmem:[#allocation2 + $0xb] sm:$0xff]
          %s291 = sadd.s32 %s247, 21
          %s292 = sld [smem:[#allocation3 + %s291]]
          %v293 = vstv %s292
          %v294 = vmul.f32 %v289, %v293
          %v295 = vmul.f32 %v290, %v293
          %v296 = vadd.f32 %v287, %v294
          %v297 = vadd.f32 %v288, %v295
          %v298 = vld [vmem:[#allocation2 + $0x4] sm:$0xff]
          %v299 = vld [vmem:[#allocation2 + $0xc] sm:$0xff]
          %s300 = sadd.s32 %s247, 28
          %s301 = sld [smem:[#allocation3 + %s300]]
          %v302 = vstv %s301
          %v303 = vmul.f32 %v298, %v302
          %v304 = vmul.f32 %v299, %v302
          %v305 = vadd.f32 %v296, %v303
          %v306 = vadd.f32 %v297, %v304
          %v307 = vld [vmem:[#allocation2 + $0x5] sm:$0xff]
          %v308 = vld [vmem:[#allocation2 + $0xd] sm:$0xff]
          %s309 = sadd.s32 %s247, 35
          %s310 = sld [smem:[#allocation3 + %s309]]
          %v311 = vstv %s310
          %v312 = vmul.f32 %v307, %v311
          %v313 = vmul.f32 %v308, %v311
          %v314 = vadd.f32 %v305, %v312
          %v315 = vadd.f32 %v306, %v313
          %v316 = vld [vmem:[#allocation2 + $0x6] sm:$0xff]
          %v317 = vld [vmem:[#allocation2 + $0xe] sm:$0xff]
          %s318 = sadd.s32 %s247, 42
          %s319 = sld [smem:[#allocation3 + %s318]]
          %v320 = vstv %s319
          %v321 = vmul.f32 %v316, %v320
          %v322 = vmul.f32 %v317, %v320
          %v323 = vadd.f32 %v314, %v321
          %v324 = vadd.f32 %v315, %v322
          %v325 = vadd.f32 %v264, %v323
          %v326 = vadd.f32 %v264, %v324
          %s327 = sadd.s32 %s247, 1
          %s328 = sld [smem:[#allocation3 + %s327]]
          %v329 = vstv %s328
          %v330 = vmul.f32 %v265, %v329
          %v331 = vmul.f32 %v266, %v329
          %s332 = sadd.s32 %s247, 8
          %s333 = sld [smem:[#allocation3 + %s332]]
          %v334 = vstv %s333
          %v335 = vmul.f32 %v271, %v334
          %v336 = vmul.f32 %v272, %v334
          %v337 = vadd.f32 %v330, %v335
          %v338 = vadd.f32 %v331, %v336
          %s339 = sadd.s32 %s247, 15
          %s340 = sld [smem:[#allocation3 + %s339]]
          %v341 = vstv %s340
          %v342 = vmul.f32 %v280, %v341
          %v343 = vmul.f32 %v281, %v341
          %v344 = vadd.f32 %v337, %v342
          %v345 = vadd.f32 %v338, %v343
          %s346 = sadd.s32 %s247, 22
          %s347 = sld [smem:[#allocation3 + %s346]]
          %v348 = vstv %s347
          %v349 = vmul.f32 %v289, %v348
          %v350 = vmul.f32 %v290, %v348
          %v351 = vadd.f32 %v344, %v349
          %v352 = vadd.f32 %v345, %v350
          %s353 = sadd.s32 %s247, 29
          %s354 = sld [smem:[#allocation3 + %s353]]
          %v355 = vstv %s354
          %v356 = vmul.f32 %v298, %v355
          %v357 = vmul.f32 %v299, %v355
          %v358 = vadd.f32 %v351, %v356
          %v359 = vadd.f32 %v352, %v357
          %s360 = sadd.s32 %s247, 36
          %s361 = sld [smem:[#allocation3 + %s360]]
          %v362 = vstv %s361
          %v363 = vmul.f32 %v307, %v362
          %v364 = vmul.f32 %v308, %v362
          %v365 = vadd.f32 %v358, %v363
          %v366 = vadd.f32 %v359, %v364
          %s367 = sadd.s32 %s247, 43
          %s368 = sld [smem:[#allocation3 + %s367]]
          %v369 = vstv %s368
          %v370 = vmul.f32 %v316, %v369
          %v371 = vmul.f32 %v317, %v369
          %v372 = vadd.f32 %v365, %v370
          %v373 = vadd.f32 %v366, %v371
          %376 = vrot.lane.b32.xlu0 %v372, 127
          %v377 = vpop.permute.xlu0 %376
          %378 = vrot.lane.b32.xlu0 %v373, 127
          %v379 = vpop.permute.xlu0 %378
          %v382 = vadd.f32 %v325, %v377
          %v383 = vadd.f32 %v326, %v379
          %s384 = sadd.s32 %s247, 2
          %s385 = sld [smem:[#allocation3 + %s384]]
          %v386 = vstv %s385
          %v387 = vmul.f32 %v265, %v386
          %v388 = vmul.f32 %v266, %v386
          %s389 = sadd.s32 %s247, 9
          %s390 = sld [smem:[#allocation3 + %s389]]
          %v391 = vstv %s390
          %v392 = vmul.f32 %v271, %v391
          %v393 = vmul.f32 %v272, %v391
          %v394 = vadd.f32 %v387, %v392
          %v395 = vadd.f32 %v388, %v393
          %s396 = sadd.s32 %s247, 16
          %s397 = sld [smem:[#allocation3 + %s396]]
          %v398 = vstv %s397
          %v399 = vmul.f32 %v280, %v398
          %v400 = vmul.f32 %v281, %v398
          %v401 = vadd.f32 %v394, %v399
          %v402 = vadd.f32 %v395, %v400
          %s403 = sadd.s32 %s247, 23
          %s404 = sld [smem:[#allocation3 + %s403]]
          %v405 = vstv %s404
          %v406 = vmul.f32 %v289, %v405
          %v407 = vmul.f32 %v290, %v405
          %v408 = vadd.f32 %v401, %v406
          %v409 = vadd.f32 %v402, %v407
          %s410 = sadd.s32 %s247, 30
          %s411 = sld [smem:[#allocation3 + %s410]]
          %v412 = vstv %s411
          %v413 = vmul.f32 %v298, %v412
          %v414 = vmul.f32 %v299, %v412
          %v415 = vadd.f32 %v408, %v413
          %v416 = vadd.f32 %v409, %v414
          %s417 = sadd.s32 %s247, 37
          %s418 = sld [smem:[#allocation3 + %s417]]
          %v419 = vstv %s418
          %v420 = vmul.f32 %v307, %v419
          %v421 = vmul.f32 %v308, %v419
          %v422 = vadd.f32 %v415, %v420
          %v423 = vadd.f32 %v416, %v421
          %s424 = sadd.s32 %s247, 44
          %s425 = sld [smem:[#allocation3 + %s424]]
          %v426 = vstv %s425
          %v427 = vmul.f32 %v316, %v426
          %v428 = vmul.f32 %v317, %v426
          %v429 = vadd.f32 %v422, %v427
          %v430 = vadd.f32 %v423, %v428
          %433 = vrot.lane.b32.xlu0 %v429, 126
          %v434 = vpop.permute.xlu0 %433
          %435 = vrot.lane.b32.xlu0 %v430, 126
          %v436 = vpop.permute.xlu0 %435
          %v439 = vadd.f32 %v382, %v434
          %v440 = vadd.f32 %v383, %v436
          %s441 = sadd.s32 %s247, 3
          %s442 = sld [smem:[#allocation3 + %s441]]
          %v443 = vstv %s442
          %v444 = vmul.f32 %v265, %v443
          %v445 = vmul.f32 %v266, %v443
          %s446 = sadd.s32 %s247, 10
          %s447 = sld [smem:[#allocation3 + %s446]]
          %v448 = vstv %s447
          %v449 = vmul.f32 %v271, %v448
          %v450 = vmul.f32 %v272, %v448
          %v451 = vadd.f32 %v444, %v449
          %v452 = vadd.f32 %v445, %v450
          %s453 = sadd.s32 %s247, 17
          %s454 = sld [smem:[#allocation3 + %s453]]
          %v455 = vstv %s454
          %v456 = vmul.f32 %v280, %v455
          %v457 = vmul.f32 %v281, %v455
          %v458 = vadd.f32 %v451, %v456
          %v459 = vadd.f32 %v452, %v457
          %s460 = sadd.s32 %s247, 24
          %s461 = sld [smem:[#allocation3 + %s460]]
          %v462 = vstv %s461
          %v463 = vmul.f32 %v289, %v462
          %v464 = vmul.f32 %v290, %v462
          %v465 = vadd.f32 %v458, %v463
          %v466 = vadd.f32 %v459, %v464
          %s467 = sadd.s32 %s247, 31
          %s468 = sld [smem:[#allocation3 + %s467]]
          %v469 = vstv %s468
          %v470 = vmul.f32 %v298, %v469
          %v471 = vmul.f32 %v299, %v469
          %v472 = vadd.f32 %v465, %v470
          %v473 = vadd.f32 %v466, %v471
          %s474 = sadd.s32 %s247, 38
          %s475 = sld [smem:[#allocation3 + %s474]]
          %v476 = vstv %s475
          %v477 = vmul.f32 %v307, %v476
          %v478 = vmul.f32 %v308, %v476
          %v479 = vadd.f32 %v472, %v477
          %v480 = vadd.f32 %v473, %v478
          %s481 = sadd.s32 %s247, 45
          %s482 = sld [smem:[#allocation3 + %s481]]
          %v483 = vstv %s482
          %v484 = vmul.f32 %v316, %v483
          %v485 = vmul.f32 %v317, %v483
          %v486 = vadd.f32 %v479, %v484
          %v487 = vadd.f32 %v480, %v485
          %490 = vrot.lane.b32.xlu0 %v486, 125
          %v491 = vpop.permute.xlu0 %490
          %492 = vrot.lane.b32.xlu0 %v487, 125
          %v493 = vpop.permute.xlu0 %492
          %v496 = vadd.f32 %v439, %v491
          %v497 = vadd.f32 %v440, %v493
          %s498 = sadd.s32 %s247, 4
          %s499 = sld [smem:[#allocation3 + %s498]]
          %v500 = vstv %s499
          %v501 = vmul.f32 %v265, %v500
          %v502 = vmul.f32 %v266, %v500
          %s503 = sadd.s32 %s247, 11
          %s504 = sld [smem:[#allocation3 + %s503]]
          %v505 = vstv %s504
          %v506 = vmul.f32 %v271, %v505
          %v507 = vmul.f32 %v272, %v505
          %v508 = vadd.f32 %v501, %v506
          %v509 = vadd.f32 %v502, %v507
          %s510 = sadd.s32 %s247, 18
          %s511 = sld [smem:[#allocation3 + %s510]]
          %v512 = vstv %s511
          %v513 = vmul.f32 %v280, %v512
          %v514 = vmul.f32 %v281, %v512
          %v515 = vadd.f32 %v508, %v513
          %v516 = vadd.f32 %v509, %v514
          %s517 = sadd.s32 %s247, 25
          %s518 = sld [smem:[#allocation3 + %s517]]
          %v519 = vstv %s518
          %v520 = vmul.f32 %v289, %v519
          %v521 = vmul.f32 %v290, %v519
          %v522 = vadd.f32 %v515, %v520
          %v523 = vadd.f32 %v516, %v521
          %s524 = sadd.s32 %s247, 32
          %s525 = sld [smem:[#allocation3 + %s524]]
          %v526 = vstv %s525
          %v527 = vmul.f32 %v298, %v526
          %v528 = vmul.f32 %v299, %v526
          %v529 = vadd.f32 %v522, %v527
          %v530 = vadd.f32 %v523, %v528
          %s531 = sadd.s32 %s247, 39
          %s532 = sld [smem:[#allocation3 + %s531]]
          %v533 = vstv %s532
          %v534 = vmul.f32 %v307, %v533
          %v535 = vmul.f32 %v308, %v533
          %v536 = vadd.f32 %v529, %v534
          %v537 = vadd.f32 %v530, %v535
          %s538 = sadd.s32 %s247, 46
          %s539 = sld [smem:[#allocation3 + %s538]]
          %v540 = vstv %s539
          %v541 = vmul.f32 %v316, %v540
          %v542 = vmul.f32 %v317, %v540
          %v543 = vadd.f32 %v536, %v541
          %v544 = vadd.f32 %v537, %v542
          %547 = vrot.lane.b32.xlu0 %v543, 124
          %v548 = vpop.permute.xlu0 %547
          %549 = vrot.lane.b32.xlu0 %v544, 124
          %v550 = vpop.permute.xlu0 %549
          %v553 = vadd.f32 %v496, %v548
          %v554 = vadd.f32 %v497, %v550
          %s555 = sadd.s32 %s247, 5
          %s556 = sld [smem:[#allocation3 + %s555]]
          %v557 = vstv %s556
          %v558 = vmul.f32 %v265, %v557
          %v559 = vmul.f32 %v266, %v557
          %s560 = sadd.s32 %s247, 12
          %s561 = sld [smem:[#allocation3 + %s560]]
          %v562 = vstv %s561
          %v563 = vmul.f32 %v271, %v562
          %v564 = vmul.f32 %v272, %v562
          %v565 = vadd.f32 %v558, %v563
          %v566 = vadd.f32 %v559, %v564
          %s567 = sadd.s32 %s247, 19
          %s568 = sld [smem:[#allocation3 + %s567]]
          %v569 = vstv %s568
          %v570 = vmul.f32 %v280, %v569
          %v571 = vmul.f32 %v281, %v569
          %v572 = vadd.f32 %v565, %v570
          %v573 = vadd.f32 %v566, %v571
          %s574 = sadd.s32 %s247, 26
          %s575 = sld [smem:[#allocation3 + %s574]]
          %v576 = vstv %s575
          %v577 = vmul.f32 %v289, %v576
          %v578 = vmul.f32 %v290, %v576
          %v579 = vadd.f32 %v572, %v577
          %v580 = vadd.f32 %v573, %v578
          %s581 = sadd.s32 %s247, 33
          %s582 = sld [smem:[#allocation3 + %s581]]
          %v583 = vstv %s582
          %v584 = vmul.f32 %v298, %v583
          %v585 = vmul.f32 %v299, %v583
          %v586 = vadd.f32 %v579, %v584
          %v587 = vadd.f32 %v580, %v585
          %s588 = sadd.s32 %s247, 40
          %s589 = sld [smem:[#allocation3 + %s588]]
          %v590 = vstv %s589
          %v591 = vmul.f32 %v307, %v590
          %v592 = vmul.f32 %v308, %v590
          %v593 = vadd.f32 %v586, %v591
          %v594 = vadd.f32 %v587, %v592
          %s595 = sadd.s32 %s247, 47
          %s596 = sld [smem:[#allocation3 + %s595]]
          %v597 = vstv %s596
          %v598 = vmul.f32 %v316, %v597
          %v599 = vmul.f32 %v317, %v597
          %v600 = vadd.f32 %v593, %v598
          %v601 = vadd.f32 %v594, %v599
          %604 = vrot.lane.b32.xlu0 %v600, 123
          %v605 = vpop.permute.xlu0 %604
          %606 = vrot.lane.b32.xlu0 %v601, 123
          %v607 = vpop.permute.xlu0 %606
          %v610 = vadd.f32 %v553, %v605
          %v611 = vadd.f32 %v554, %v607
          %s612 = sadd.s32 %s247, 6
          %s613 = sld [smem:[#allocation3 + %s612]]
          %v614 = vstv %s613
          %v615 = vmul.f32 %v265, %v614
          %v616 = vmul.f32 %v266, %v614
          %s617 = sadd.s32 %s247, 13
          %s618 = sld [smem:[#allocation3 + %s617]]
          %v619 = vstv %s618
          %v620 = vmul.f32 %v271, %v619
          %v621 = vmul.f32 %v272, %v619
          %v622 = vadd.f32 %v615, %v620
          %v623 = vadd.f32 %v616, %v621
          %s624 = sadd.s32 %s247, 20
          %s625 = sld [smem:[#allocation3 + %s624]]
          %v626 = vstv %s625
          %v627 = vmul.f32 %v280, %v626
          %v628 = vmul.f32 %v281, %v626
          %v629 = vadd.f32 %v622, %v627
          %v630 = vadd.f32 %v623, %v628
          %s631 = sadd.s32 %s247, 27
          %s632 = sld [smem:[#allocation3 + %s631]]
          %v633 = vstv %s632
          %v634 = vmul.f32 %v289, %v633
          %v635 = vmul.f32 %v290, %v633
          %v636 = vadd.f32 %v629, %v634
          %v637 = vadd.f32 %v630, %v635
          %s638 = sadd.s32 %s247, 34
          %s639 = sld [smem:[#allocation3 + %s638]]
          %v640 = vstv %s639
          %v641 = vmul.f32 %v298, %v640
          %v642 = vmul.f32 %v299, %v640
          %v643 = vadd.f32 %v636, %v641
          %v644 = vadd.f32 %v637, %v642
          %s645 = sadd.s32 %s247, 41
          %s646 = sld [smem:[#allocation3 + %s645]]
          %v647 = vstv %s646
          %v648 = vmul.f32 %v307, %v647
          %v649 = vmul.f32 %v308, %v647
          %v650 = vadd.f32 %v643, %v648
          %v651 = vadd.f32 %v644, %v649
          %s652 = sadd.s32 %s247, 48
          %s653 = sld [smem:[#allocation3 + %s652]]
          %v654 = vstv %s653
          %v655 = vmul.f32 %v316, %v654
          %v656 = vmul.f32 %v317, %v654
          %v657 = vadd.f32 %v650, %v655
          %v658 = vadd.f32 %v651, %v656
          %661 = vrot.lane.b32.xlu0 %v657, 122
          %v662 = vpop.permute.xlu0 %661
          %663 = vrot.lane.b32.xlu0 %v658, 122
          %v664 = vpop.permute.xlu0 %663
          %v667 = vadd.f32 %v610, %v662
          %v668 = vadd.f32 %v611, %v664
          %s669 = scalar_lea.vmem %s217, %s248 [#allocation8]
          %vm670 = vcmask 130048
          %671 = vst.msk [vmem:[%s669] sm:$0xff] %vm670, %v667
          %672 = vst.msk [vmem:[%s669 + $0x8] sm:$0xff] %vm670, %v668
        $region45: #{_rep_dw_conv_m.1} parent=31 // loop_footer
          %s244 = sadd.s32 1, %s240
        $region46: #{_rep_dw_conv_m.1} parent=31 // loop_footer_branch
          %239 = sbr.rel target = $region42
        $region47: #{_rep_dw_conv_m.1} parent=31 // loop_exit
          _
        %s673 = sand.u32 %s111, 1
        %s674 = scalar_lea.sflag [#allocation4], %s673
        %s675 = sand.u32 %s111, 1
        %s676 = smul.addr %s675, 64
        %s677 = scalar_lea.vmem [#allocation8], %s676
        // Predicated region
        $region48: #{_rep_dw_conv_m.1} parent=31 // pred_check
          %p678 = pneg %p121
        $region49: #{_rep_dw_conv_m.1} parent=31 // pred_check_branch
          %680 = sbr.rel (%p678) target = $region51
        $region50: #{_rep_dw_conv_m.1} parent=31 // pred_region
          %s681 = smul.u32 4, %s24
          %s683 = ssub.s32 1024, 1024
          %684 = vsyncadd %s674, %s683
          %s685 = smul.addr %s681, 2
          %s686 = smul.addr %s23, 8
          %s687 = sadd.s32 %s685, %s686
          %s688 = smul.addr %s687, 128
          %s689 = scalar_lea.hbm %s3, %s688
          %s690 = sshll.u32 %s677, 4
          %s691 = int_to_ptr.vmem [resolvable:$true] %s690
          %696 = dma.vmem_to_hbm [thread:$0]  %s691, 1024, %s689, %s674, 128, 128, 8
        $region51: #{_rep_dw_conv_m.1} parent=31 // pred_fallthru
          _
      $region32: #{_rep_dw_conv_m.1} parent=5 // pred_fallthru
        _
      %p697 = scmp.le.s32.totalorder 2, %s14
      // Predicated region
      $region52: #{_rep_dw_conv_m.1} parent=5 // pred_check
        %p698 = pneg %p697
      $region53: #{_rep_dw_conv_m.1} parent=5 // pred_check_branch
        %700 = sbr.rel (%p698) target = $region55
      $region54: #{_rep_dw_conv_m.1} parent=5 // pred_region
        %s701 = ssub.s32 %s14, 2
        // Predicated region
        $region56: #{_rep_dw_conv_m.1} parent=54 // pred_check
          %p702 = pneg %p127
        $region57: #{_rep_dw_conv_m.1} parent=54 // pred_check_branch
          %704 = sbr.rel (%p702) target = $region59
        $region58: #{_rep_dw_conv_m.1} parent=54 // pred_region
          %s705 = sand.u32 %s112, 1
          %s706 = scalar_lea.sflag [#allocation4], %s705
          %s707 = sand.u32 %s112, 1
          %s708 = smul.addr %s707, 64
          %s709 = scalar_lea.vmem [#allocation8], %s708
          %710 = dma.done %s706, 1024
        $region59: #{_rep_dw_conv_m.1} parent=54 // pred_fallthru
          _
      $region55: #{_rep_dw_conv_m.1} parent=5 // pred_fallthru
        _
    $region6: #{_rep_dw_conv_m.1} parent=1 // loop_footer
      %s18 = sadd.s32 1, %s14
    $region7: #{_rep_dw_conv_m.1} parent=1 // loop_footer_branch
      %13 = sbr.rel target = $region3
    $region8: #{_rep_dw_conv_m.1} parent=1 // loop_exit
      _
    %711 = vsyncpa [#allocation4], 1
    %s712 = scalar_lea.sflag [#allocation4], 1
    %713 = vsyncpa %s712, 1
    %714 = vsyncpa [#allocation5], 1
    %s715 = scalar_lea.sflag [#allocation5], 1
    %716 = vsyncpa %s715, 1
    %717 = vsyncpa [#allocation7], 1

</llo_original>
